<compile_context>
chip_gen: v7x
topology: tpu7x:2x2x1
jax: 0.10.0
libtpu: 0.0.40
codegen_flags: <defaults>
</compile_context>

<pallas_src>
import functools

import jax
import jax.numpy as jnp
import numpy as np
from jax.experimental import pallas as pl
from jax.experimental.pallas import tpu as pltpu

# ----------------------------- configuration -------------------------------
M, NQ, NK = 2, 8, 12          # batch, #queries, #keys
DX, DT = 32, 2                # embed_dim, dim of translation coordinates t
NUM_HEADS, HEAD_DIM = 2, 16   # inner_dim = 32
PHI_HIDDEN = 16               # hidden width of the phi(t_q - t_k) MLP
DFF = DX                      # feedforward_dim defaults to embed_dim
LN_EPS = 1e-5

_PACK_ROWS = ("bo", "bp1", "bp2", "g1", "b1", "g2", "b2", "bf1", "bf2")


# ------------------------------- the kernel --------------------------------
def _te_layer_kernel(num_heads, head_dim, phi_hidden,
                     xq_ref, xk_ref, tq_ref, tk_ref, mask_ref,
                     wq_ref, wkv_ref, wo_ref, wp1_ref, wp2_ref,
                     wf1_ref, wf2_ref, pk_ref,
                     xq_out_ref, tq_out_ref):
    """One grid step = one batch element. Everything lives in VMEM."""
    f32 = jnp.float32
    xq = xq_ref[0]          # [nq, dx]
    xk = xk_ref[0]          # [nk, dx]
    tq = tq_ref[0]          # [nq, dt]
    tk = tk_ref[0]          # [nk, dt]
    mask = mask_ref[0]      # [nq, nk] additive (0 / -1e9)

    nq, dx = xq.shape
    nk = xk.shape[0]
    inner = num_heads * head_dim
    dff = wf1_ref.shape[1]

    # --- packed 1-row parameters (one row per parameter, lane offset 0) ----
    bo_row = pk_ref[0:1, 0:dx]
    bp1_row = pk_ref[1:2, 0:phi_hidden]
    # row 2 = bp2 (read per head below)
    g1_row = pk_ref[3:4, 0:dx]
    b1_row = pk_ref[4:5, 0:dx]
    g2_row = pk_ref[5:6, 0:dx]
    b2_row = pk_ref[6:7, 0:dx]
    bf1_row = pk_ref[7:8, 0:dff]
    bf2_row = pk_ref[8:9, 0:dx]

    # --- projections (attention scale pre-folded into wq; K/V fused) -------
    q = jnp.dot(xq, wq_ref[...], preferred_element_type=f32)    # [nq, inner]
    kv = jnp.dot(xk, wkv_ref[...], preferred_element_type=f32)  # [nk, 2*inner]

    # --- translation-equivariant bias  phi(tq_i - tk_j) ---------------------
    # first layer (dt == 2): two explicit FMAs, no rank-4 broadcast, no XLU
    # reduce over dt.  A[q,p] - B[k,p] == (wp1 @ (tq_q - tk_k))[p] + bp1[p].
    wp1 = wp1_ref[...]                                           # [dt, ph]
    a_mat = tq[:, 0:1] * wp1[0:1, :] + tq[:, 1:2] * wp1[1:2, :] + bp1_row  # [nq, ph]
    b_mat = tk[:, 0:1] * wp1[0:1, :] + tk[:, 1:2] * wp1[1:2, :]            # [nk, ph]
    b_t = b_mat.T                                                # [ph, nk]
    wp2 = wp2_ref[...]                                           # [ph, nh]

    # per-head additive bias; mask and bp2 folded in once, accumulated from
    # 2-D [nq, nk] tiles (no rank-3 phi tensor, no cross-lane reductions)
    bias = [mask + pk_ref[2:3, hh:hh + 1] for hh in range(num_heads)]
    for p in range(phi_hidden):
        phi_p = jnp.maximum(a_mat[:, p:p + 1] - b_t[p:p + 1, :], 0.0)  # [nq, nk]
        for hh in range(num_heads):
            bias[hh] = bias[hh] + phi_p * wp2[p:p + 1, hh:hh + 1]

    # --- per-head attention; output projection accumulated per head --------
    acc = jnp.zeros((nq, dx), f32)
    p_acc = jnp.zeros((nq, nk), f32)
    for hh in range(num_heads):
        lo = hh * head_dim
        q_h = q[:, lo:lo + head_dim]
        k_h = kv[:, lo:lo + head_dim]
        v_h = kv[:, inner + lo:inner + lo + head_dim]
        dots = jax.lax.dot_general(q_h, k_h, (((1,), (1,)), ((), ())),
                                   preferred_element_type=f32)     # [nq, nk]
        s = dots + bias[hh]
        s = s - jnp.max(s, axis=-1, keepdims=True)
        e = jnp.exp(s)
        # Exact normalization: the probabilities feed the pseudo-location
        # update directly, so the approximate EUP reciprocal's ~1e-3 relative
        # error is not acceptable here.  One [nq,1] division per head is cheap.
        p = e * (1.0 / jnp.sum(e, axis=-1, keepdims=True))
        p_acc = p_acc + p
        head_out = jnp.dot(p, v_h, preferred_element_type=f32)     # [nq, hd]
        acc = acc + jnp.dot(head_out, wo_ref[lo:lo + head_dim, :],
                            preferred_element_type=f32)            # [nq, dx]
    attn_out = acc + bo_row

    # --- equivariant pseudo-location update: tq + sum_j a_ij (tk_j - tq_i) --
    p_mean = p_acc * (1.0 / num_heads)
    tq_new = (tq + jnp.dot(p_mean, tk, preferred_element_type=f32)
              - jnp.sum(p_mean, axis=-1, keepdims=True) * tq)

    def layer_norm(x, g, b):
        mu = jnp.mean(x, axis=-1, keepdims=True)
        var = jnp.mean(jnp.square(x - mu), axis=-1, keepdims=True)
        return (x - mu) * jax.lax.rsqrt(var + LN_EPS) * g + b

    # norm_first = False path; dropout p=0.0 -> identity
    x1 = xq + layer_norm(attn_out, g1_row, b1_row)
    h1 = jnp.maximum(
        jnp.dot(x1, wf1_ref[...], preferred_element_type=f32) + bf1_row, 0.0)
    ff = jnp.dot(h1, wf2_ref[...], preferred_element_type=f32) + bf2_row
    x2 = layer_norm(x1 + ff, g2_row, b2_row)

    xq_out_ref[0] = x2
    tq_out_ref[0] = tq_new


# ------------------------------- wrapper ------------------------------------
def te_cross_attention_layer(xq, xk, tq, tk, mask_add, params,
                             num_heads=NUM_HEADS, head_dim=HEAD_DIM):
    m, nq, dx = xq.shape
    nk = xk.shape[1]
    dt = tq.shape[2]
    inner = num_heads * head_dim
    phi_hidden = params["wp1"].shape[1]
    dff = params["wf1"].shape[1]
    scale = float(head_dim) ** -0.5

    # fold the attention scale into wq; fuse K and V projection weights
    wq = (params["wq"] * scale).astype(jnp.float32)
    wkv = jnp.concatenate([params["wk"], params["wv"]], axis=1).astype(jnp.float32)

    # pack all 1-row parameters into a single [9, pack_w] array (one DMA)
    pack_w = max(dx, phi_hidden, num_heads, dff)

    def _row(v):
        v = v.reshape(1, -1).astype(jnp.float32)
        return jnp.pad(v, ((0, 0), (0, pack_w - v.shape[1])))

    pack = jnp.concatenate([_row(params[n]) for n in _PACK_ROWS], axis=0)

    weights = [wq, wkv, params["wo"], params["wp1"], params["wp2"],
               params["wf1"], params["wf2"], pack]

    in_specs = [
        pl.BlockSpec((1, nq, dx), lambda b: (b, 0, 0)),
        pl.BlockSpec((1, nk, dx), lambda b: (b, 0, 0)),
        pl.BlockSpec((1, nq, dt), lambda b: (b, 0, 0)),
        pl.BlockSpec((1, nk, dt), lambda b: (b, 0, 0)),
        pl.BlockSpec((1, nq, nk), lambda b: (b, 0, 0)),
    ] + [pl.BlockSpec(w.shape, lambda b: (0, 0)) for w in weights]

    out_specs = [
        pl.BlockSpec((1, nq, dx), lambda b: (b, 0, 0)),
        pl.BlockSpec((1, nq, dt), lambda b: (b, 0, 0)),
    ]
    out_shape = (
        jax.ShapeDtypeStruct((m, nq, dx), jnp.float32),
        jax.ShapeDtypeStruct((m, nq, dt), jnp.float32),
    )

    # advisory cost estimate so XLA can schedule around this tiny kernel
    flops = m * (
        2 * nq * dx * inner                      # q projection
        + 2 * nk * dx * 2 * inner                # fused kv projection
        + 8 * (nq + nk) * phi_hidden             # phi first layer (FMAs)
        + phi_hidden * nq * nk * (2 + 2 * num_heads)   # bias accumulation
        + num_heads * (4 * nq * nk * head_dim + 2 * nq * head_dim * dx
                       + 6 * nq * nk)            # attn + per-head out-proj
        + 2 * nq * nk * dt + 6 * nq * dt         # tq update
        + 4 * nq * dx * dff                      # feedforward
        + 16 * nq * dx)                          # layernorms / residuals
    transcendentals = m * (num_heads * nq * nk + num_heads * nq + 2 * nq)
    bytes_accessed = 4 * (xq.size + xk.size + tq.size + tk.size + mask_add.size
                          + sum(int(w.size) for w in weights)
                          + m * nq * dx + m * nq * dt)
    ce = pl.CostEstimate(flops=int(flops),
                         transcendentals=int(transcendentals),
                         bytes_accessed=int(bytes_accessed))

    kernel = functools.partial(_te_layer_kernel, num_heads, head_dim, phi_hidden)

    return pl.pallas_call(
        kernel,
        grid=(m,),
        in_specs=in_specs,
        out_specs=out_specs,
        out_shape=out_shape,
        compiler_params=pltpu.CompilerParams(dimension_semantics=("parallel",)),
        cost_estimate=ce,
    )(xq, xk, tq, tk, mask_add, *weights)


# --------------------------- pure-JAX reference ------------------------------
def reference_forward(xq, xk, tq, tk, mask_add, P,
                      num_heads=NUM_HEADS, head_dim=HEAD_DIM):
    scale = float(head_dim) ** -0.5
    m, nq, _ = xq.shape
    nk = xk.shape[1]
    q = (xq @ P["wq"]).reshape(m, nq, num_heads, head_dim).transpose(0, 2, 1, 3)
    k = (xk @ P["wk"]).reshape(m, nk, num_heads, head_dim).transpose(0, 2, 1, 3)
    v = (xk @ P["wv"]).reshape(m, nk, num_heads, head_dim).transpose(0, 2, 1, 3)
    diff = tq[:, :, None, :] - tk[:, None, :, :]
    phi = jax.nn.relu(jnp.einsum("mqkd,dp->mqkp", diff, P["wp1"]) + P["bp1"][0])
    bias = (jnp.einsum("mqkp,ph->mqkh", phi, P["wp2"]) + P["bp2"][0]).transpose(0, 3, 1, 2)
    dots = jnp.einsum("mhqd,mhkd->mhqk", q, k) * scale + bias + mask_add[:, None]
    p = jax.nn.softmax(dots, axis=-1)
    out = jnp.einsum("mhqk,mhkd->mhqd", p, v).transpose(0, 2, 1, 3)
    out = out.reshape(m, nq, num_heads * head_dim)
    attn_out = out @ P["wo"] + P["bo"][0]
    p_mean = p.mean(axis=1)
    tq_new = tq + jnp.einsum("mqk,mkd->mqd", p_mean, tk) \
        - p_mean.sum(-1, keepdims=True) * tq

    def ln(x, g, b):
        mu = x.mean(-1, keepdims=True)
        var = ((x - mu) ** 2).mean(-1, keepdims=True)
        return (x - mu) / jnp.sqrt(var + LN_EPS) * g[0] + b[0]

    x1 = xq + ln(attn_out, P["g1"], P["b1"])
    ff = jax.nn.relu(x1 @ P["wf1"] + P["bf1"][0]) @ P["wf2"] + P["bf2"][0]
    x2 = ln(x1 + ff, P["g2"], P["b2"])
    return x2, tq_new


# --------------------------------- main --------------------------------------
def _init_params(key):
    inner = NUM_HEADS * HEAD_DIM
    ks = jax.random.split(key, 8)
    P = {
        "wq": 0.05 * jax.random.normal(ks[0], (DX, inner), jnp.float32),
        "wk": 0.05 * jax.random.normal(ks[1], (DX, inner), jnp.float32),
        "wv": 0.05 * jax.random.normal(ks[2], (DX, inner), jnp.float32),
        "wo": 0.05 * jax.random.normal(ks[3], (inner, DX), jnp.float32),
        "bo": jnp.zeros((1, DX), jnp.float32),
        "wp1": 0.5 * jax.random.normal(ks[4], (DT, PHI_HIDDEN), jnp.float32),
        "bp1": jnp.zeros((1, PHI_HIDDEN), jnp.float32),
        "wp2": 0.5 * jax.random.normal(ks[5], (PHI_HIDDEN, NUM_HEADS), jnp.float32),
        "bp2": jnp.zeros((1, NUM_HEADS), jnp.float32),
        "g1": jnp.ones((1, DX), jnp.float32),
        "b1": jnp.zeros((1, DX), jnp.float32),
        "g2": jnp.ones((1, DX), jnp.float32),
        "b2": jnp.zeros((1, DX), jnp.float32),
        "wf1": 0.05 * jax.random.normal(ks[6], (DX, DFF), jnp.float32),
        "bf1": jnp.zeros((1, DFF), jnp.float32),
        "wf2": 0.05 * jax.random.normal(ks[7], (DFF, DX), jnp.float32),
        "bf2": jnp.zeros((1, DX), jnp.float32),
    }
    return P


if __name__ == "__main__":
    root = jax.random.PRNGKey(0)
    k_xq, k_xk, k_tq, k_tk, k_m, k_p = jax.random.split(root, 6)

    xq = jax.random.normal(k_xq, (M, NQ, DX), jnp.float32)
    xk = jax.random.normal(k_xk, (M, NK, DX), jnp.float32)
    tq = jax.random.normal(k_tq, (M, NQ, DT), jnp.float32)
    tk = jax.random.normal(k_tk, (M, NK, DT), jnp.float32)

    # boolean mask (True = attend); guarantee every query sees key 0
    mask_bool = jax.random.bernoulli(k_m, 0.8, (M, NQ, NK))
    mask_bool = mask_bool.at[:, :, 0].set(True)
    mask_add = jnp.where(mask_bool, 0.0, -1e9).astype(jnp.float32)

    params = _init_params(k_p)

    xq_out, tq_out = te_cross_attention_layer(xq, xk, tq, tk, mask_add, params)
    jax.block_until_ready((xq_out, tq_out))

    xq_ref, tq_ref = reference_forward(xq, xk, tq, tk, mask_add, params)
    # Softmax normalization is now exact inside the kernel, so the results
    # agree with the pure-JAX reference to f32 accumulation-order noise.
    np.testing.assert_allclose(np.asarray(xq_out), np.asarray(xq_ref),
                               rtol=1e-4, atol=1e-4)
    np.testing.assert_allclose(np.asarray(tq_out), np.asarray(tq_ref),
                               rtol=1e-4, atol=1e-4)

    print("KERNEL_OK")
</pallas_src>

<mosaic_0001>
module attributes {stable_mosaic.version = 11 : i64} {
  func.func @_te_layer_kernel(%arg0: i32, %arg1: memref<1x8x32xf32, #tpu.memory_space<vmem>>, %arg2: memref<1x12x32xf32, #tpu.memory_space<vmem>>, %arg3: memref<1x8x2xf32, #tpu.memory_space<vmem>>, %arg4: memref<1x12x2xf32, #tpu.memory_space<vmem>>, %arg5: memref<1x8x12xf32, #tpu.memory_space<vmem>>, %arg6: memref<32x32xf32, #tpu.memory_space<vmem>>, %arg7: memref<32x64xf32, #tpu.memory_space<vmem>>, %arg8: memref<32x32xf32, #tpu.memory_space<vmem>>, %arg9: memref<2x16xf32, #tpu.memory_space<vmem>>, %arg10: memref<16x2xf32, #tpu.memory_space<vmem>>, %arg11: memref<32x32xf32, #tpu.memory_space<vmem>>, %arg12: memref<32x32xf32, #tpu.memory_space<vmem>>, %arg13: memref<9x32xf32, #tpu.memory_space<vmem>>, %arg14: memref<1x8x32xf32, #tpu.memory_space<vmem>>, %arg15: memref<1x8x2xf32, #tpu.memory_space<vmem>>) attributes {dimension_semantics = [#tpu.dimension_semantics<parallel>], iteration_bounds = array<i64: 2>, scalar_prefetch = 0 : i64, scratch_operands = 0 : i64, tpu.core_type = #tpu.core_type<tc>, window_params = [{transform_indices = @transform_0, window_bounds = array<i64: 1, 8, 32>}, {transform_indices = @transform_1, window_bounds = array<i64: 1, 12, 32>}, {transform_indices = @transform_2, window_bounds = array<i64: 1, 8, 2>}, {transform_indices = @transform_3, window_bounds = array<i64: 1, 12, 2>}, {transform_indices = @transform_4, window_bounds = array<i64: 1, 8, 12>}, {pipeline_mode = #tpu.pipeline_mode<synchronous>, transform_indices = @transform_5, window_bounds = array<i64: 32, 32>}, {pipeline_mode = #tpu.pipeline_mode<synchronous>, transform_indices = @transform_6, window_bounds = array<i64: 32, 64>}, {pipeline_mode = #tpu.pipeline_mode<synchronous>, transform_indices = @transform_7, window_bounds = array<i64: 32, 32>}, {pipeline_mode = #tpu.pipeline_mode<synchronous>, transform_indices = @transform_8, window_bounds = array<i64: 2, 16>}, {pipeline_mode = #tpu.pipeline_mode<synchronous>, transform_indices = @transform_9, window_bounds = array<i64: 16, 2>}, {pipeline_mode = #tpu.pipeline_mode<synchronous>, transform_indices = @transform_10, window_bounds = array<i64: 32, 32>}, {pipeline_mode = #tpu.pipeline_mode<synchronous>, transform_indices = @transform_11, window_bounds = array<i64: 32, 32>}, {pipeline_mode = #tpu.pipeline_mode<synchronous>, transform_indices = @transform_12, window_bounds = array<i64: 9, 32>}, {transform_indices = @transform_13, window_bounds = array<i64: 1, 8, 32>}, {transform_indices = @transform_14, window_bounds = array<i64: 1, 8, 2>}]} {
    %c0 = arith.constant 0 : index
    %c0_0 = arith.constant 0 : index
    %c0_1 = arith.constant 0 : index
    %0 = vector.load %arg1[%c0, %c0_0, %c0_1] : memref<1x8x32xf32, #tpu.memory_space<vmem>>, vector<1x8x32xf32>
    %1 = vector.shape_cast %0 : vector<1x8x32xf32> to vector<8x32xf32>
    %c0_2 = arith.constant 0 : index
    %c0_3 = arith.constant 0 : index
    %c0_4 = arith.constant 0 : index
    %2 = vector.load %arg2[%c0_2, %c0_3, %c0_4] : memref<1x12x32xf32, #tpu.memory_space<vmem>>, vector<1x12x32xf32>
    %3 = vector.shape_cast %2 : vector<1x12x32xf32> to vector<12x32xf32>
    %c0_5 = arith.constant 0 : index
    %c0_6 = arith.constant 0 : index
    %c0_7 = arith.constant 0 : index
    %4 = vector.load %arg3[%c0_5, %c0_6, %c0_7] : memref<1x8x2xf32, #tpu.memory_space<vmem>>, vector<1x8x2xf32>
    %5 = vector.shape_cast %4 : vector<1x8x2xf32> to vector<8x2xf32>
    %c0_8 = arith.constant 0 : index
    %c0_9 = arith.constant 0 : index
    %c0_10 = arith.constant 0 : index
    %6 = vector.load %arg4[%c0_8, %c0_9, %c0_10] : memref<1x12x2xf32, #tpu.memory_space<vmem>>, vector<1x12x2xf32>
    %7 = vector.shape_cast %6 : vector<1x12x2xf32> to vector<12x2xf32>
    %c0_11 = arith.constant 0 : index
    %c0_12 = arith.constant 0 : index
    %c0_13 = arith.constant 0 : index
    %8 = vector.load %arg5[%c0_11, %c0_12, %c0_13] : memref<1x8x12xf32, #tpu.memory_space<vmem>>, vector<1x8x12xf32>
    %9 = vector.shape_cast %8 : vector<1x8x12xf32> to vector<8x12xf32>
    %c0_14 = arith.constant 0 : index
    %c0_15 = arith.constant 0 : index
    %10 = vector.load %arg13[%c0_14, %c0_15] : memref<9x32xf32, #tpu.memory_space<vmem>>, vector<1x32xf32>
    %c1 = arith.constant 1 : index
    %c0_16 = arith.constant 0 : index
    %11 = vector.load %arg13[%c1, %c0_16] : memref<9x32xf32, #tpu.memory_space<vmem>>, vector<1x16xf32>
    %c3 = arith.constant 3 : index
    %c0_17 = arith.constant 0 : index
    %12 = vector.load %arg13[%c3, %c0_17] : memref<9x32xf32, #tpu.memory_space<vmem>>, vector<1x32xf32>
    %c4 = arith.constant 4 : index
    %c0_18 = arith.constant 0 : index
    %13 = vector.load %arg13[%c4, %c0_18] : memref<9x32xf32, #tpu.memory_space<vmem>>, vector<1x32xf32>
    %c5 = arith.constant 5 : index
    %c0_19 = arith.constant 0 : index
    %14 = vector.load %arg13[%c5, %c0_19] : memref<9x32xf32, #tpu.memory_space<vmem>>, vector<1x32xf32>
    %c6 = arith.constant 6 : index
    %c0_20 = arith.constant 0 : index
    %15 = vector.load %arg13[%c6, %c0_20] : memref<9x32xf32, #tpu.memory_space<vmem>>, vector<1x32xf32>
    %c7 = arith.constant 7 : index
    %c0_21 = arith.constant 0 : index
    %16 = vector.load %arg13[%c7, %c0_21] : memref<9x32xf32, #tpu.memory_space<vmem>>, vector<1x32xf32>
    %c8 = arith.constant 8 : index
    %c0_22 = arith.constant 0 : index
    %17 = vector.load %arg13[%c8, %c0_22] : memref<9x32xf32, #tpu.memory_space<vmem>>, vector<1x32xf32>
    %c0_23 = arith.constant 0 : index
    %c0_24 = arith.constant 0 : index
    %18 = vector.load %arg6[%c0_23, %c0_24] : memref<32x32xf32, #tpu.memory_space<vmem>>, vector<32x32xf32>
    %cst = arith.constant dense<0.000000e+00> : vector<8x32xf32>
    %19 = tpu.matmul %1, %18, %cst {dimension_numbers = #tpu.dot_dimension_numbers<[1], [0], [0], [1], [0, 0, 1, 1], [], []>} : vector<8x32xf32>, vector<32x32xf32>, vector<8x32xf32> -> vector<8x32xf32>
    %c0_25 = arith.constant 0 : index
    %c0_26 = arith.constant 0 : index
    %20 = vector.load %arg7[%c0_25, %c0_26] : memref<32x64xf32, #tpu.memory_space<vmem>>, vector<32x64xf32>
    %cst_27 = arith.constant dense<0.000000e+00> : vector<12x64xf32>
    %21 = tpu.matmul %3, %20, %cst_27 {dimension_numbers = #tpu.dot_dimension_numbers<[1], [0], [0], [1], [0, 0, 1, 1], [], []>} : vector<12x32xf32>, vector<32x64xf32>, vector<12x64xf32> -> vector<12x64xf32>
    %c0_28 = arith.constant 0 : index
    %c0_29 = arith.constant 0 : index
    %22 = vector.load %arg9[%c0_28, %c0_29] : memref<2x16xf32, #tpu.memory_space<vmem>>, vector<2x16xf32>
    %23 = vector.extract_strided_slice %5 {offsets = [0, 0], sizes = [8, 1], strides = [1, 1]} : vector<8x2xf32> to vector<8x1xf32>
    %24 = vector.extract_strided_slice %22 {offsets = [0, 0], sizes = [1, 16], strides = [1, 1]} : vector<2x16xf32> to vector<1x16xf32>
    %25 = vector.broadcast %23 : vector<8x1xf32> to vector<8x16xf32>
    %26 = vector.broadcast %24 : vector<1x16xf32> to vector<8x16xf32>
    %27 = arith.mulf %25, %26 : vector<8x16xf32>
    %28 = vector.extract_strided_slice %5 {offsets = [0, 1], sizes = [8, 1], strides = [1, 1]} : vector<8x2xf32> to vector<8x1xf32>
    %29 = vector.extract_strided_slice %22 {offsets = [1, 0], sizes = [1, 16], strides = [1, 1]} : vector<2x16xf32> to vector<1x16xf32>
    %30 = vector.broadcast %28 : vector<8x1xf32> to vector<8x16xf32>
    %31 = vector.broadcast %29 : vector<1x16xf32> to vector<8x16xf32>
    %32 = arith.mulf %30, %31 : vector<8x16xf32>
    %33 = arith.addf %27, %32 : vector<8x16xf32>
    %34 = vector.broadcast %11 : vector<1x16xf32> to vector<8x16xf32>
    %35 = arith.addf %33, %34 : vector<8x16xf32>
    %36 = vector.extract_strided_slice %7 {offsets = [0, 0], sizes = [12, 1], strides = [1, 1]} : vector<12x2xf32> to vector<12x1xf32>
    %37 = vector.extract_strided_slice %22 {offsets = [0, 0], sizes = [1, 16], strides = [1, 1]} : vector<2x16xf32> to vector<1x16xf32>
    %38 = vector.broadcast %36 : vector<12x1xf32> to vector<12x16xf32>
    %39 = vector.broadcast %37 : vector<1x16xf32> to vector<12x16xf32>
    %40 = arith.mulf %38, %39 : vector<12x16xf32>
    %41 = vector.extract_strided_slice %7 {offsets = [0, 1], sizes = [12, 1], strides = [1, 1]} : vector<12x2xf32> to vector<12x1xf32>
    %42 = vector.extract_strided_slice %22 {offsets = [1, 0], sizes = [1, 16], strides = [1, 1]} : vector<2x16xf32> to vector<1x16xf32>
    %43 = vector.broadcast %41 : vector<12x1xf32> to vector<12x16xf32>
    %44 = vector.broadcast %42 : vector<1x16xf32> to vector<12x16xf32>
    %45 = arith.mulf %43, %44 : vector<12x16xf32>
    %46 = arith.addf %40, %45 : vector<12x16xf32>
    %47 = tpu.transpose %46, [1, 0] : vector<12x16xf32> -> vector<16x12xf32>
    %c0_30 = arith.constant 0 : index
    %c0_31 = arith.constant 0 : index
    %48 = vector.load %arg10[%c0_30, %c0_31] : memref<16x2xf32, #tpu.memory_space<vmem>>, vector<16x2xf32>
    %c2 = arith.constant 2 : index
    %c0_32 = arith.constant 0 : index
    %49 = vector.load %arg13[%c2, %c0_32] : memref<9x32xf32, #tpu.memory_space<vmem>>, vector<1x1xf32>
    %50 = vector.broadcast %49 : vector<1x1xf32> to vector<8x12xf32>
    %51 = arith.addf %9, %50 : vector<8x12xf32>
    %c2_33 = arith.constant 2 : index
    %c1_34 = arith.constant 1 : index
    %52 = vector.load %arg13[%c2_33, %c1_34] : memref<9x32xf32, #tpu.memory_space<vmem>>, vector<1x1xf32>
    %53 = vector.broadcast %52 : vector<1x1xf32> to vector<8x12xf32>
    %54 = arith.addf %9, %53 : vector<8x12xf32>
    %55 = vector.extract_strided_slice %35 {offsets = [0, 0], sizes = [8, 1], strides = [1, 1]} : vector<8x16xf32> to vector<8x1xf32>
    %56 = vector.extract_strided_slice %47 {offsets = [0, 0], sizes = [1, 12], strides = [1, 1]} : vector<16x12xf32> to vector<1x12xf32>
    %57 = vector.broadcast %55 : vector<8x1xf32> to vector<8x12xf32>
    %58 = vector.broadcast %56 : vector<1x12xf32> to vector<8x12xf32>
    %59 = arith.subf %57, %58 : vector<8x12xf32>
    %cst_35 = arith.constant 0.000000e+00 : f32
    %60 = vector.broadcast %cst_35 : f32 to vector<8x12xf32>
    %61 = arith.maximumf %59, %60 : vector<8x12xf32>
    %62 = vector.extract_strided_slice %48 {offsets = [0, 0], sizes = [1, 1], strides = [1, 1]} : vector<16x2xf32> to vector<1x1xf32>
    %63 = vector.broadcast %62 : vector<1x1xf32> to vector<8x12xf32>
    %64 = arith.mulf %61, %63 : vector<8x12xf32>
    %65 = arith.addf %51, %64 : vector<8x12xf32>
    %66 = vector.extract_strided_slice %48 {offsets = [0, 1], sizes = [1, 1], strides = [1, 1]} : vector<16x2xf32> to vector<1x1xf32>
    %67 = vector.broadcast %66 : vector<1x1xf32> to vector<8x12xf32>
    %68 = arith.mulf %61, %67 : vector<8x12xf32>
    %69 = arith.addf %54, %68 : vector<8x12xf32>
    %70 = vector.extract_strided_slice %35 {offsets = [0, 1], sizes = [8, 1], strides = [1, 1]} : vector<8x16xf32> to vector<8x1xf32>
    %71 = vector.extract_strided_slice %47 {offsets = [1, 0], sizes = [1, 12], strides = [1, 1]} : vector<16x12xf32> to vector<1x12xf32>
    %72 = vector.broadcast %70 : vector<8x1xf32> to vector<8x12xf32>
    %73 = vector.broadcast %71 : vector<1x12xf32> to vector<8x12xf32>
    %74 = arith.subf %72, %73 : vector<8x12xf32>
    %cst_36 = arith.constant 0.000000e+00 : f32
    %75 = vector.broadcast %cst_36 : f32 to vector<8x12xf32>
    %76 = arith.maximumf %74, %75 : vector<8x12xf32>
    %77 = vector.extract_strided_slice %48 {offsets = [1, 0], sizes = [1, 1], strides = [1, 1]} : vector<16x2xf32> to vector<1x1xf32>
    %78 = vector.broadcast %77 : vector<1x1xf32> to vector<8x12xf32>
    %79 = arith.mulf %76, %78 : vector<8x12xf32>
    %80 = arith.addf %65, %79 : vector<8x12xf32>
    %81 = vector.extract_strided_slice %48 {offsets = [1, 1], sizes = [1, 1], strides = [1, 1]} : vector<16x2xf32> to vector<1x1xf32>
    %82 = vector.broadcast %81 : vector<1x1xf32> to vector<8x12xf32>
    %83 = arith.mulf %76, %82 : vector<8x12xf32>
    %84 = arith.addf %69, %83 : vector<8x12xf32>
    %85 = vector.extract_strided_slice %35 {offsets = [0, 2], sizes = [8, 1], strides = [1, 1]} : vector<8x16xf32> to vector<8x1xf32>
    %86 = vector.extract_strided_slice %47 {offsets = [2, 0], sizes = [1, 12], strides = [1, 1]} : vector<16x12xf32> to vector<1x12xf32>
    %87 = vector.broadcast %85 : vector<8x1xf32> to vector<8x12xf32>
    %88 = vector.broadcast %86 : vector<1x12xf32> to vector<8x12xf32>
    %89 = arith.subf %87, %88 : vector<8x12xf32>
    %cst_37 = arith.constant 0.000000e+00 : f32
    %90 = vector.broadcast %cst_37 : f32 to vector<8x12xf32>
    %91 = arith.maximumf %89, %90 : vector<8x12xf32>
    %92 = vector.extract_strided_slice %48 {offsets = [2, 0], sizes = [1, 1], strides = [1, 1]} : vector<16x2xf32> to vector<1x1xf32>
    %93 = vector.broadcast %92 : vector<1x1xf32> to vector<8x12xf32>
    %94 = arith.mulf %91, %93 : vector<8x12xf32>
    %95 = arith.addf %80, %94 : vector<8x12xf32>
    %96 = vector.extract_strided_slice %48 {offsets = [2, 1], sizes = [1, 1], strides = [1, 1]} : vector<16x2xf32> to vector<1x1xf32>
    %97 = vector.broadcast %96 : vector<1x1xf32> to vector<8x12xf32>
    %98 = arith.mulf %91, %97 : vector<8x12xf32>
    %99 = arith.addf %84, %98 : vector<8x12xf32>
    %100 = vector.extract_strided_slice %35 {offsets = [0, 3], sizes = [8, 1], strides = [1, 1]} : vector<8x16xf32> to vector<8x1xf32>
    %101 = vector.extract_strided_slice %47 {offsets = [3, 0], sizes = [1, 12], strides = [1, 1]} : vector<16x12xf32> to vector<1x12xf32>
    %102 = vector.broadcast %100 : vector<8x1xf32> to vector<8x12xf32>
    %103 = vector.broadcast %101 : vector<1x12xf32> to vector<8x12xf32>
    %104 = arith.subf %102, %103 : vector<8x12xf32>
    %cst_38 = arith.constant 0.000000e+00 : f32
    %105 = vector.broadcast %cst_38 : f32 to vector<8x12xf32>
    %106 = arith.maximumf %104, %105 : vector<8x12xf32>
    %107 = vector.extract_strided_slice %48 {offsets = [3, 0], sizes = [1, 1], strides = [1, 1]} : vector<16x2xf32> to vector<1x1xf32>
    %108 = vector.broadcast %107 : vector<1x1xf32> to vector<8x12xf32>
    %109 = arith.mulf %106, %108 : vector<8x12xf32>
    %110 = arith.addf %95, %109 : vector<8x12xf32>
    %111 = vector.extract_strided_slice %48 {offsets = [3, 1], sizes = [1, 1], strides = [1, 1]} : vector<16x2xf32> to vector<1x1xf32>
    %112 = vector.broadcast %111 : vector<1x1xf32> to vector<8x12xf32>
    %113 = arith.mulf %106, %112 : vector<8x12xf32>
    %114 = arith.addf %99, %113 : vector<8x12xf32>
    %115 = vector.extract_strided_slice %35 {offsets = [0, 4], sizes = [8, 1], strides = [1, 1]} : vector<8x16xf32> to vector<8x1xf32>
    %116 = vector.extract_strided_slice %47 {offsets = [4, 0], sizes = [1, 12], strides = [1, 1]} : vector<16x12xf32> to vector<1x12xf32>
    %117 = vector.broadcast %115 : vector<8x1xf32> to vector<8x12xf32>
    %118 = vector.broadcast %116 : vector<1x12xf32> to vector<8x12xf32>
    %119 = arith.subf %117, %118 : vector<8x12xf32>
    %cst_39 = arith.constant 0.000000e+00 : f32
    %120 = vector.broadcast %cst_39 : f32 to vector<8x12xf32>
    %121 = arith.maximumf %119, %120 : vector<8x12xf32>
    %122 = vector.extract_strided_slice %48 {offsets = [4, 0], sizes = [1, 1], strides = [1, 1]} : vector<16x2xf32> to vector<1x1xf32>
    %123 = vector.broadcast %122 : vector<1x1xf32> to vector<8x12xf32>
    %124 = arith.mulf %121, %123 : vector<8x12xf32>
    %125 = arith.addf %110, %124 : vector<8x12xf32>
    %126 = vector.extract_strided_slice %48 {offsets = [4, 1], sizes = [1, 1], strides = [1, 1]} : vector<16x2xf32> to vector<1x1xf32>
    %127 = vector.broadcast %126 : vector<1x1xf32> to vector<8x12xf32>
    %128 = arith.mulf %121, %127 : vector<8x12xf32>
    %129 = arith.addf %114, %128 : vector<8x12xf32>
    %130 = vector.extract_strided_slice %35 {offsets = [0, 5], sizes = [8, 1], strides = [1, 1]} : vector<8x16xf32> to vector<8x1xf32>
    %131 = vector.extract_strided_slice %47 {offsets = [5, 0], sizes = [1, 12], strides = [1, 1]} : vector<16x12xf32> to vector<1x12xf32>
    %132 = vector.broadcast %130 : vector<8x1xf32> to vector<8x12xf32>
    %133 = vector.broadcast %131 : vector<1x12xf32> to vector<8x12xf32>
    %134 = arith.subf %132, %133 : vector<8x12xf32>
    %cst_40 = arith.constant 0.000000e+00 : f32
    %135 = vector.broadcast %cst_40 : f32 to vector<8x12xf32>
    %136 = arith.maximumf %134, %135 : vector<8x12xf32>
    %137 = vector.extract_strided_slice %48 {offsets = [5, 0], sizes = [1, 1], strides = [1, 1]} : vector<16x2xf32> to vector<1x1xf32>
    %138 = vector.broadcast %137 : vector<1x1xf32> to vector<8x12xf32>
    %139 = arith.mulf %136, %138 : vector<8x12xf32>
    %140 = arith.addf %125, %139 : vector<8x12xf32>
    %141 = vector.extract_strided_slice %48 {offsets = [5, 1], sizes = [1, 1], strides = [1, 1]} : vector<16x2xf32> to vector<1x1xf32>
    %142 = vector.broadcast %141 : vector<1x1xf32> to vector<8x12xf32>
    %143 = arith.mulf %136, %142 : vector<8x12xf32>
    %144 = arith.addf %129, %143 : vector<8x12xf32>
    %145 = vector.extract_strided_slice %35 {offsets = [0, 6], sizes = [8, 1], strides = [1, 1]} : vector<8x16xf32> to vector<8x1xf32>
    %146 = vector.extract_strided_slice %47 {offsets = [6, 0], sizes = [1, 12], strides = [1, 1]} : vector<16x12xf32> to vector<1x12xf32>
    %147 = vector.broadcast %145 : vector<8x1xf32> to vector<8x12xf32>
    %148 = vector.broadcast %146 : vector<1x12xf32> to vector<8x12xf32>
    %149 = arith.subf %147, %148 : vector<8x12xf32>
    %cst_41 = arith.constant 0.000000e+00 : f32
    %150 = vector.broadcast %cst_41 : f32 to vector<8x12xf32>
    %151 = arith.maximumf %149, %150 : vector<8x12xf32>
    %152 = vector.extract_strided_slice %48 {offsets = [6, 0], sizes = [1, 1], strides = [1, 1]} : vector<16x2xf32> to vector<1x1xf32>
    %153 = vector.broadcast %152 : vector<1x1xf32> to vector<8x12xf32>
    %154 = arith.mulf %151, %153 : vector<8x12xf32>
    %155 = arith.addf %140, %154 : vector<8x12xf32>
    %156 = vector.extract_strided_slice %48 {offsets = [6, 1], sizes = [1, 1], strides = [1, 1]} : vector<16x2xf32> to vector<1x1xf32>
    %157 = vector.broadcast %156 : vector<1x1xf32> to vector<8x12xf32>
    %158 = arith.mulf %151, %157 : vector<8x12xf32>
    %159 = arith.addf %144, %158 : vector<8x12xf32>
    %160 = vector.extract_strided_slice %35 {offsets = [0, 7], sizes = [8, 1], strides = [1, 1]} : vector<8x16xf32> to vector<8x1xf32>
    %161 = vector.extract_strided_slice %47 {offsets = [7, 0], sizes = [1, 12], strides = [1, 1]} : vector<16x12xf32> to vector<1x12xf32>
    %162 = vector.broadcast %160 : vector<8x1xf32> to vector<8x12xf32>
    %163 = vector.broadcast %161 : vector<1x12xf32> to vector<8x12xf32>
    %164 = arith.subf %162, %163 : vector<8x12xf32>
    %cst_42 = arith.constant 0.000000e+00 : f32
    %165 = vector.broadcast %cst_42 : f32 to vector<8x12xf32>
    %166 = arith.maximumf %164, %165 : vector<8x12xf32>
    %167 = vector.extract_strided_slice %48 {offsets = [7, 0], sizes = [1, 1], strides = [1, 1]} : vector<16x2xf32> to vector<1x1xf32>
    %168 = vector.broadcast %167 : vector<1x1xf32> to vector<8x12xf32>
    %169 = arith.mulf %166, %168 : vector<8x12xf32>
    %170 = arith.addf %155, %169 : vector<8x12xf32>
    %171 = vector.extract_strided_slice %48 {offsets = [7, 1], sizes = [1, 1], strides = [1, 1]} : vector<16x2xf32> to vector<1x1xf32>
    %172 = vector.broadcast %171 : vector<1x1xf32> to vector<8x12xf32>
    %173 = arith.mulf %166, %172 : vector<8x12xf32>
    %174 = arith.addf %159, %173 : vector<8x12xf32>
    %175 = vector.extract_strided_slice %35 {offsets = [0, 8], sizes = [8, 1], strides = [1, 1]} : vector<8x16xf32> to vector<8x1xf32>
    %176 = vector.extract_strided_slice %47 {offsets = [8, 0], sizes = [1, 12], strides = [1, 1]} : vector<16x12xf32> to vector<1x12xf32>
    %177 = vector.broadcast %175 : vector<8x1xf32> to vector<8x12xf32>
    %178 = vector.broadcast %176 : vector<1x12xf32> to vector<8x12xf32>
    %179 = arith.subf %177, %178 : vector<8x12xf32>
    %cst_43 = arith.constant 0.000000e+00 : f32
    %180 = vector.broadcast %cst_43 : f32 to vector<8x12xf32>
    %181 = arith.maximumf %179, %180 : vector<8x12xf32>
    %182 = vector.extract_strided_slice %48 {offsets = [8, 0], sizes = [1, 1], strides = [1, 1]} : vector<16x2xf32> to vector<1x1xf32>
    %183 = vector.broadcast %182 : vector<1x1xf32> to vector<8x12xf32>
    %184 = arith.mulf %181, %183 : vector<8x12xf32>
    %185 = arith.addf %170, %184 : vector<8x12xf32>
    %186 = vector.extract_strided_slice %48 {offsets = [8, 1], sizes = [1, 1], strides = [1, 1]} : vector<16x2xf32> to vector<1x1xf32>
    %187 = vector.broadcast %186 : vector<1x1xf32> to vector<8x12xf32>
    %188 = arith.mulf %181, %187 : vector<8x12xf32>
    %189 = arith.addf %174, %188 : vector<8x12xf32>
    %190 = vector.extract_strided_slice %35 {offsets = [0, 9], sizes = [8, 1], strides = [1, 1]} : vector<8x16xf32> to vector<8x1xf32>
    %191 = vector.extract_strided_slice %47 {offsets = [9, 0], sizes = [1, 12], strides = [1, 1]} : vector<16x12xf32> to vector<1x12xf32>
    %192 = vector.broadcast %190 : vector<8x1xf32> to vector<8x12xf32>
    %193 = vector.broadcast %191 : vector<1x12xf32> to vector<8x12xf32>
    %194 = arith.subf %192, %193 : vector<8x12xf32>
    %cst_44 = arith.constant 0.000000e+00 : f32
    %195 = vector.broadcast %cst_44 : f32 to vector<8x12xf32>
    %196 = arith.maximumf %194, %195 : vector<8x12xf32>
    %197 = vector.extract_strided_slice %48 {offsets = [9, 0], sizes = [1, 1], strides = [1, 1]} : vector<16x2xf32> to vector<1x1xf32>
    %198 = vector.broadcast %197 : vector<1x1xf32> to vector<8x12xf32>
    %199 = arith.mulf %196, %198 : vector<8x12xf32>
    %200 = arith.addf %185, %199 : vector<8x12xf32>
    %201 = vector.extract_strided_slice %48 {offsets = [9, 1], sizes = [1, 1], strides = [1, 1]} : vector<16x2xf32> to vector<1x1xf32>
    %202 = vector.broadcast %201 : vector<1x1xf32> to vector<8x12xf32>
    %203 = arith.mulf %196, %202 : vector<8x12xf32>
    %204 = arith.addf %189, %203 : vector<8x12xf32>
    %205 = vector.extract_strided_slice %35 {offsets = [0, 10], sizes = [8, 1], strides = [1, 1]} : vector<8x16xf32> to vector<8x1xf32>
    %206 = vector.extract_strided_slice %47 {offsets = [10, 0], sizes = [1, 12], strides = [1, 1]} : vector<16x12xf32> to vector<1x12xf32>
    %207 = vector.broadcast %205 : vector<8x1xf32> to vector<8x12xf32>
    %208 = vector.broadcast %206 : vector<1x12xf32> to vector<8x12xf32>
    %209 = arith.subf %207, %208 : vector<8x12xf32>
    %cst_45 = arith.constant 0.000000e+00 : f32
    %210 = vector.broadcast %cst_45 : f32 to vector<8x12xf32>
    %211 = arith.maximumf %209, %210 : vector<8x12xf32>
    %212 = vector.extract_strided_slice %48 {offsets = [10, 0], sizes = [1, 1], strides = [1, 1]} : vector<16x2xf32> to vector<1x1xf32>
    %213 = vector.broadcast %212 : vector<1x1xf32> to vector<8x12xf32>
    %214 = arith.mulf %211, %213 : vector<8x12xf32>
    %215 = arith.addf %200, %214 : vector<8x12xf32>
    %216 = vector.extract_strided_slice %48 {offsets = [10, 1], sizes = [1, 1], strides = [1, 1]} : vector<16x2xf32> to vector<1x1xf32>
    %217 = vector.broadcast %216 : vector<1x1xf32> to vector<8x12xf32>
    %218 = arith.mulf %211, %217 : vector<8x12xf32>
    %219 = arith.addf %204, %218 : vector<8x12xf32>
    %220 = vector.extract_strided_slice %35 {offsets = [0, 11], sizes = [8, 1], strides = [1, 1]} : vector<8x16xf32> to vector<8x1xf32>
    %221 = vector.extract_strided_slice %47 {offsets = [11, 0], sizes = [1, 12], strides = [1, 1]} : vector<16x12xf32> to vector<1x12xf32>
    %222 = vector.broadcast %220 : vector<8x1xf32> to vector<8x12xf32>
    %223 = vector.broadcast %221 : vector<1x12xf32> to vector<8x12xf32>
    %224 = arith.subf %222, %223 : vector<8x12xf32>
    %cst_46 = arith.constant 0.000000e+00 : f32
    %225 = vector.broadcast %cst_46 : f32 to vector<8x12xf32>
    %226 = arith.maximumf %224, %225 : vector<8x12xf32>
    %227 = vector.extract_strided_slice %48 {offsets = [11, 0], sizes = [1, 1], strides = [1, 1]} : vector<16x2xf32> to vector<1x1xf32>
    %228 = vector.broadcast %227 : vector<1x1xf32> to vector<8x12xf32>
    %229 = arith.mulf %226, %228 : vector<8x12xf32>
    %230 = arith.addf %215, %229 : vector<8x12xf32>
    %231 = vector.extract_strided_slice %48 {offsets = [11, 1], sizes = [1, 1], strides = [1, 1]} : vector<16x2xf32> to vector<1x1xf32>
    %232 = vector.broadcast %231 : vector<1x1xf32> to vector<8x12xf32>
    %233 = arith.mulf %226, %232 : vector<8x12xf32>
    %234 = arith.addf %219, %233 : vector<8x12xf32>
    %235 = vector.extract_strided_slice %35 {offsets = [0, 12], sizes = [8, 1], strides = [1, 1]} : vector<8x16xf32> to vector<8x1xf32>
    %236 = vector.extract_strided_slice %47 {offsets = [12, 0], sizes = [1, 12], strides = [1, 1]} : vector<16x12xf32> to vector<1x12xf32>
    %237 = vector.broadcast %235 : vector<8x1xf32> to vector<8x12xf32>
    %238 = vector.broadcast %236 : vector<1x12xf32> to vector<8x12xf32>
    %239 = arith.subf %237, %238 : vector<8x12xf32>
    %cst_47 = arith.constant 0.000000e+00 : f32
    %240 = vector.broadcast %cst_47 : f32 to vector<8x12xf32>
    %241 = arith.maximumf %239, %240 : vector<8x12xf32>
    %242 = vector.extract_strided_slice %48 {offsets = [12, 0], sizes = [1, 1], strides = [1, 1]} : vector<16x2xf32> to vector<1x1xf32>
    %243 = vector.broadcast %242 : vector<1x1xf32> to vector<8x12xf32>
    %244 = arith.mulf %241, %243 : vector<8x12xf32>
    %245 = arith.addf %230, %244 : vector<8x12xf32>
    %246 = vector.extract_strided_slice %48 {offsets = [12, 1], sizes = [1, 1], strides = [1, 1]} : vector<16x2xf32> to vector<1x1xf32>
    %247 = vector.broadcast %246 : vector<1x1xf32> to vector<8x12xf32>
    %248 = arith.mulf %241, %247 : vector<8x12xf32>
    %249 = arith.addf %234, %248 : vector<8x12xf32>
    %250 = vector.extract_strided_slice %35 {offsets = [0, 13], sizes = [8, 1], strides = [1, 1]} : vector<8x16xf32> to vector<8x1xf32>
    %251 = vector.extract_strided_slice %47 {offsets = [13, 0], sizes = [1, 12], strides = [1, 1]} : vector<16x12xf32> to vector<1x12xf32>
    %252 = vector.broadcast %250 : vector<8x1xf32> to vector<8x12xf32>
    %253 = vector.broadcast %251 : vector<1x12xf32> to vector<8x12xf32>
    %254 = arith.subf %252, %253 : vector<8x12xf32>
    %cst_48 = arith.constant 0.000000e+00 : f32
    %255 = vector.broadcast %cst_48 : f32 to vector<8x12xf32>
    %256 = arith.maximumf %254, %255 : vector<8x12xf32>
    %257 = vector.extract_strided_slice %48 {offsets = [13, 0], sizes = [1, 1], strides = [1, 1]} : vector<16x2xf32> to vector<1x1xf32>
    %258 = vector.broadcast %257 : vector<1x1xf32> to vector<8x12xf32>
    %259 = arith.mulf %256, %258 : vector<8x12xf32>
    %260 = arith.addf %245, %259 : vector<8x12xf32>
    %261 = vector.extract_strided_slice %48 {offsets = [13, 1], sizes = [1, 1], strides = [1, 1]} : vector<16x2xf32> to vector<1x1xf32>
    %262 = vector.broadcast %261 : vector<1x1xf32> to vector<8x12xf32>
    %263 = arith.mulf %256, %262 : vector<8x12xf32>
    %264 = arith.addf %249, %263 : vector<8x12xf32>
    %265 = vector.extract_strided_slice %35 {offsets = [0, 14], sizes = [8, 1], strides = [1, 1]} : vector<8x16xf32> to vector<8x1xf32>
    %266 = vector.extract_strided_slice %47 {offsets = [14, 0], sizes = [1, 12], strides = [1, 1]} : vector<16x12xf32> to vector<1x12xf32>
    %267 = vector.broadcast %265 : vector<8x1xf32> to vector<8x12xf32>
    %268 = vector.broadcast %266 : vector<1x12xf32> to vector<8x12xf32>
    %269 = arith.subf %267, %268 : vector<8x12xf32>
    %cst_49 = arith.constant 0.000000e+00 : f32
    %270 = vector.broadcast %cst_49 : f32 to vector<8x12xf32>
    %271 = arith.maximumf %269, %270 : vector<8x12xf32>
    %272 = vector.extract_strided_slice %48 {offsets = [14, 0], sizes = [1, 1], strides = [1, 1]} : vector<16x2xf32> to vector<1x1xf32>
    %273 = vector.broadcast %272 : vector<1x1xf32> to vector<8x12xf32>
    %274 = arith.mulf %271, %273 : vector<8x12xf32>
    %275 = arith.addf %260, %274 : vector<8x12xf32>
    %276 = vector.extract_strided_slice %48 {offsets = [14, 1], sizes = [1, 1], strides = [1, 1]} : vector<16x2xf32> to vector<1x1xf32>
    %277 = vector.broadcast %276 : vector<1x1xf32> to vector<8x12xf32>
    %278 = arith.mulf %271, %277 : vector<8x12xf32>
    %279 = arith.addf %264, %278 : vector<8x12xf32>
    %280 = vector.extract_strided_slice %35 {offsets = [0, 15], sizes = [8, 1], strides = [1, 1]} : vector<8x16xf32> to vector<8x1xf32>
    %281 = vector.extract_strided_slice %47 {offsets = [15, 0], sizes = [1, 12], strides = [1, 1]} : vector<16x12xf32> to vector<1x12xf32>
    %282 = vector.broadcast %280 : vector<8x1xf32> to vector<8x12xf32>
    %283 = vector.broadcast %281 : vector<1x12xf32> to vector<8x12xf32>
    %284 = arith.subf %282, %283 : vector<8x12xf32>
    %cst_50 = arith.constant 0.000000e+00 : f32
    %285 = vector.broadcast %cst_50 : f32 to vector<8x12xf32>
    %286 = arith.maximumf %284, %285 : vector<8x12xf32>
    %287 = vector.extract_strided_slice %48 {offsets = [15, 0], sizes = [1, 1], strides = [1, 1]} : vector<16x2xf32> to vector<1x1xf32>
    %288 = vector.broadcast %287 : vector<1x1xf32> to vector<8x12xf32>
    %289 = arith.mulf %286, %288 : vector<8x12xf32>
    %290 = arith.addf %275, %289 : vector<8x12xf32>
    %291 = vector.extract_strided_slice %48 {offsets = [15, 1], sizes = [1, 1], strides = [1, 1]} : vector<16x2xf32> to vector<1x1xf32>
    %292 = vector.broadcast %291 : vector<1x1xf32> to vector<8x12xf32>
    %293 = arith.mulf %286, %292 : vector<8x12xf32>
    %294 = arith.addf %279, %293 : vector<8x12xf32>
    %cst_51 = arith.constant 0.000000e+00 : f32
    %295 = vector.broadcast %cst_51 : f32 to vector<8x32xf32>
    %cst_52 = arith.constant 0.000000e+00 : f32
    %296 = vector.broadcast %cst_52 : f32 to vector<8x12xf32>
    %297 = vector.extract_strided_slice %19 {offsets = [0, 0], sizes = [8, 16], strides = [1, 1]} : vector<8x32xf32> to vector<8x16xf32>
    %298 = vector.extract_strided_slice %21 {offsets = [0, 0], sizes = [12, 16], strides = [1, 1]} : vector<12x64xf32> to vector<12x16xf32>
    %299 = vector.extract_strided_slice %21 {offsets = [0, 32], sizes = [12, 16], strides = [1, 1]} : vector<12x64xf32> to vector<12x16xf32>
    %cst_53 = arith.constant dense<0.000000e+00> : vector<8x12xf32>
    %300 = tpu.matmul %297, %298, %cst_53 {dimension_numbers = #tpu.dot_dimension_numbers<[1], [1], [0], [0], [0, 0, 1, 0], [], []>} : vector<8x16xf32>, vector<12x16xf32>, vector<8x12xf32> -> vector<8x12xf32>
    %301 = arith.addf %300, %290 : vector<8x12xf32>
    %cst_54 = arith.constant dense<0xFF800000> : vector<8xf32>
    %302 = vector.multi_reduction <maximumf>, %301, %cst_54 [1] : vector<8x12xf32> to vector<8xf32>
    %303 = vector.shape_cast %302 : vector<8xf32> to vector<8x1xf32>
    %304 = vector.broadcast %303 : vector<8x1xf32> to vector<8x12xf32>
    %305 = arith.subf %301, %304 : vector<8x12xf32>
    %306 = math.exp %305 : vector<8x12xf32>
    %cst_55 = arith.constant dense<0.000000e+00> : vector<8xf32>
    %307 = vector.multi_reduction <add>, %306, %cst_55 [1] : vector<8x12xf32> to vector<8xf32>
    %308 = vector.shape_cast %307 : vector<8xf32> to vector<8x1xf32>
    %cst_56 = arith.constant 1.000000e+00 : f32
    %309 = vector.broadcast %cst_56 : f32 to vector<8x1xf32>
    %310 = arith.divf %309, %308 : vector<8x1xf32>
    %311 = vector.broadcast %310 : vector<8x1xf32> to vector<8x12xf32>
    %312 = arith.mulf %306, %311 : vector<8x12xf32>
    %313 = arith.addf %296, %312 : vector<8x12xf32>
    %cst_57 = arith.constant dense<0.000000e+00> : vector<8x16xf32>
    %314 = tpu.matmul %312, %299, %cst_57 {dimension_numbers = #tpu.dot_dimension_numbers<[1], [0], [0], [1], [0, 0, 1, 1], [], []>} : vector<8x12xf32>, vector<12x16xf32>, vector<8x16xf32> -> vector<8x16xf32>
    %c0_58 = arith.constant 0 : index
    %c0_59 = arith.constant 0 : index
    %315 = vector.load %arg8[%c0_58, %c0_59] : memref<32x32xf32, #tpu.memory_space<vmem>>, vector<16x32xf32>
    %cst_60 = arith.constant dense<0.000000e+00> : vector<8x32xf32>
    %316 = tpu.matmul %314, %315, %cst_60 {dimension_numbers = #tpu.dot_dimension_numbers<[1], [0], [0], [1], [0, 0, 1, 1], [], []>} : vector<8x16xf32>, vector<16x32xf32>, vector<8x32xf32> -> vector<8x32xf32>
    %317 = arith.addf %295, %316 : vector<8x32xf32>
    %318 = vector.extract_strided_slice %19 {offsets = [0, 16], sizes = [8, 16], strides = [1, 1]} : vector<8x32xf32> to vector<8x16xf32>
    %319 = vector.extract_strided_slice %21 {offsets = [0, 16], sizes = [12, 16], strides = [1, 1]} : vector<12x64xf32> to vector<12x16xf32>
    %320 = vector.extract_strided_slice %21 {offsets = [0, 48], sizes = [12, 16], strides = [1, 1]} : vector<12x64xf32> to vector<12x16xf32>
    %cst_61 = arith.constant dense<0.000000e+00> : vector<8x12xf32>
    %321 = tpu.matmul %318, %319, %cst_61 {dimension_numbers = #tpu.dot_dimension_numbers<[1], [1], [0], [0], [0, 0, 1, 0], [], []>} : vector<8x16xf32>, vector<12x16xf32>, vector<8x12xf32> -> vector<8x12xf32>
    %322 = arith.addf %321, %294 : vector<8x12xf32>
    %cst_62 = arith.constant dense<0xFF800000> : vector<8xf32>
    %323 = vector.multi_reduction <maximumf>, %322, %cst_62 [1] : vector<8x12xf32> to vector<8xf32>
    %324 = vector.shape_cast %323 : vector<8xf32> to vector<8x1xf32>
    %325 = vector.broadcast %324 : vector<8x1xf32> to vector<8x12xf32>
    %326 = arith.subf %322, %325 : vector<8x12xf32>
    %327 = math.exp %326 : vector<8x12xf32>
    %cst_63 = arith.constant dense<0.000000e+00> : vector<8xf32>
    %328 = vector.multi_reduction <add>, %327, %cst_63 [1] : vector<8x12xf32> to vector<8xf32>
    %329 = vector.shape_cast %328 : vector<8xf32> to vector<8x1xf32>
    %cst_64 = arith.constant 1.000000e+00 : f32
    %330 = vector.broadcast %cst_64 : f32 to vector<8x1xf32>
    %331 = arith.divf %330, %329 : vector<8x1xf32>
    %332 = vector.broadcast %331 : vector<8x1xf32> to vector<8x12xf32>
    %333 = arith.mulf %327, %332 : vector<8x12xf32>
    %334 = arith.addf %313, %333 : vector<8x12xf32>
    %cst_65 = arith.constant dense<0.000000e+00> : vector<8x16xf32>
    %335 = tpu.matmul %333, %320, %cst_65 {dimension_numbers = #tpu.dot_dimension_numbers<[1], [0], [0], [1], [0, 0, 1, 1], [], []>} : vector<8x12xf32>, vector<12x16xf32>, vector<8x16xf32> -> vector<8x16xf32>
    %c16 = arith.constant 16 : index
    %c0_66 = arith.constant 0 : index
    %336 = vector.load %arg8[%c16, %c0_66] : memref<32x32xf32, #tpu.memory_space<vmem>>, vector<16x32xf32>
    %cst_67 = arith.constant dense<0.000000e+00> : vector<8x32xf32>
    %337 = tpu.matmul %335, %336, %cst_67 {dimension_numbers = #tpu.dot_dimension_numbers<[1], [0], [0], [1], [0, 0, 1, 1], [], []>} : vector<8x16xf32>, vector<16x32xf32>, vector<8x32xf32> -> vector<8x32xf32>
    %338 = arith.addf %317, %337 : vector<8x32xf32>
    %339 = vector.broadcast %10 : vector<1x32xf32> to vector<8x32xf32>
    %340 = arith.addf %338, %339 : vector<8x32xf32>
    %cst_68 = arith.constant 5.000000e-01 : f32
    %341 = vector.broadcast %cst_68 : f32 to vector<8x12xf32>
    %342 = arith.mulf %334, %341 : vector<8x12xf32>
    %cst_69 = arith.constant dense<0.000000e+00> : vector<8x2xf32>
    %343 = tpu.matmul %342, %7, %cst_69 {dimension_numbers = #tpu.dot_dimension_numbers<[1], [0], [0], [1], [0, 0, 1, 1], [], []>} : vector<8x12xf32>, vector<12x2xf32>, vector<8x2xf32> -> vector<8x2xf32>
    %344 = arith.addf %5, %343 : vector<8x2xf32>
    %cst_70 = arith.constant dense<0.000000e+00> : vector<8xf32>
    %345 = vector.multi_reduction <add>, %342, %cst_70 [1] : vector<8x12xf32> to vector<8xf32>
    %346 = vector.shape_cast %345 : vector<8xf32> to vector<8x1xf32>
    %347 = vector.broadcast %346 : vector<8x1xf32> to vector<8x2xf32>
    %348 = arith.mulf %347, %5 : vector<8x2xf32>
    %349 = arith.subf %344, %348 : vector<8x2xf32>
    %cst_71 = arith.constant dense<0.000000e+00> : vector<8xf32>
    %350 = vector.multi_reduction <add>, %340, %cst_71 [1] : vector<8x32xf32> to vector<8xf32>
    %351 = vector.shape_cast %350 : vector<8xf32> to vector<8x1xf32>
    %cst_72 = arith.constant 3.200000e+01 : f32
    %352 = vector.broadcast %cst_72 : f32 to vector<8x1xf32>
    %353 = arith.divf %351, %352 : vector<8x1xf32>
    %354 = vector.broadcast %353 : vector<8x1xf32> to vector<8x32xf32>
    %355 = arith.subf %340, %354 : vector<8x32xf32>
    %356 = arith.mulf %355, %355 : vector<8x32xf32>
    %cst_73 = arith.constant dense<0.000000e+00> : vector<8xf32>
    %357 = vector.multi_reduction <add>, %356, %cst_73 [1] : vector<8x32xf32> to vector<8xf32>
    %358 = vector.shape_cast %357 : vector<8xf32> to vector<8x1xf32>
    %cst_74 = arith.constant 3.200000e+01 : f32
    %359 = vector.broadcast %cst_74 : f32 to vector<8x1xf32>
    %360 = arith.divf %358, %359 : vector<8x1xf32>
    %361 = vector.broadcast %353 : vector<8x1xf32> to vector<8x32xf32>
    %362 = arith.subf %340, %361 : vector<8x32xf32>
    %cst_75 = arith.constant 9.99999974E-6 : f32
    %363 = vector.broadcast %cst_75 : f32 to vector<8x1xf32>
    %364 = arith.addf %360, %363 : vector<8x1xf32>
    %365 = math.rsqrt %364 : vector<8x1xf32>
    %366 = vector.broadcast %365 : vector<8x1xf32> to vector<8x32xf32>
    %367 = arith.mulf %362, %366 : vector<8x32xf32>
    %368 = vector.broadcast %12 : vector<1x32xf32> to vector<8x32xf32>
    %369 = arith.mulf %367, %368 : vector<8x32xf32>
    %370 = vector.broadcast %13 : vector<1x32xf32> to vector<8x32xf32>
    %371 = arith.addf %369, %370 : vector<8x32xf32>
    %372 = arith.addf %1, %371 : vector<8x32xf32>
    %c0_76 = arith.constant 0 : index
    %c0_77 = arith.constant 0 : index
    %373 = vector.load %arg11[%c0_76, %c0_77] : memref<32x32xf32, #tpu.memory_space<vmem>>, vector<32x32xf32>
    %cst_78 = arith.constant dense<0.000000e+00> : vector<8x32xf32>
    %374 = tpu.matmul %372, %373, %cst_78 {dimension_numbers = #tpu.dot_dimension_numbers<[1], [0], [0], [1], [0, 0, 1, 1], [], []>} : vector<8x32xf32>, vector<32x32xf32>, vector<8x32xf32> -> vector<8x32xf32>
    %375 = vector.broadcast %16 : vector<1x32xf32> to vector<8x32xf32>
    %376 = arith.addf %374, %375 : vector<8x32xf32>
    %cst_79 = arith.constant 0.000000e+00 : f32
    %377 = vector.broadcast %cst_79 : f32 to vector<8x32xf32>
    %378 = arith.maximumf %376, %377 : vector<8x32xf32>
    %c0_80 = arith.constant 0 : index
    %c0_81 = arith.constant 0 : index
    %379 = vector.load %arg12[%c0_80, %c0_81] : memref<32x32xf32, #tpu.memory_space<vmem>>, vector<32x32xf32>
    %cst_82 = arith.constant dense<0.000000e+00> : vector<8x32xf32>
    %380 = tpu.matmul %378, %379, %cst_82 {dimension_numbers = #tpu.dot_dimension_numbers<[1], [0], [0], [1], [0, 0, 1, 1], [], []>} : vector<8x32xf32>, vector<32x32xf32>, vector<8x32xf32> -> vector<8x32xf32>
    %381 = vector.broadcast %17 : vector<1x32xf32> to vector<8x32xf32>
    %382 = arith.addf %380, %381 : vector<8x32xf32>
    %383 = arith.addf %372, %382 : vector<8x32xf32>
    %cst_83 = arith.constant dense<0.000000e+00> : vector<8xf32>
    %384 = vector.multi_reduction <add>, %383, %cst_83 [1] : vector<8x32xf32> to vector<8xf32>
    %385 = vector.shape_cast %384 : vector<8xf32> to vector<8x1xf32>
    %cst_84 = arith.constant 3.200000e+01 : f32
    %386 = vector.broadcast %cst_84 : f32 to vector<8x1xf32>
    %387 = arith.divf %385, %386 : vector<8x1xf32>
    %388 = vector.broadcast %387 : vector<8x1xf32> to vector<8x32xf32>
    %389 = arith.subf %383, %388 : vector<8x32xf32>
    %390 = arith.mulf %389, %389 : vector<8x32xf32>
    %cst_85 = arith.constant dense<0.000000e+00> : vector<8xf32>
    %391 = vector.multi_reduction <add>, %390, %cst_85 [1] : vector<8x32xf32> to vector<8xf32>
    %392 = vector.shape_cast %391 : vector<8xf32> to vector<8x1xf32>
    %cst_86 = arith.constant 3.200000e+01 : f32
    %393 = vector.broadcast %cst_86 : f32 to vector<8x1xf32>
    %394 = arith.divf %392, %393 : vector<8x1xf32>
    %395 = vector.broadcast %387 : vector<8x1xf32> to vector<8x32xf32>
    %396 = arith.subf %383, %395 : vector<8x32xf32>
    %cst_87 = arith.constant 9.99999974E-6 : f32
    %397 = vector.broadcast %cst_87 : f32 to vector<8x1xf32>
    %398 = arith.addf %394, %397 : vector<8x1xf32>
    %399 = math.rsqrt %398 : vector<8x1xf32>
    %400 = vector.broadcast %399 : vector<8x1xf32> to vector<8x32xf32>
    %401 = arith.mulf %396, %400 : vector<8x32xf32>
    %402 = vector.broadcast %14 : vector<1x32xf32> to vector<8x32xf32>
    %403 = arith.mulf %401, %402 : vector<8x32xf32>
    %404 = vector.broadcast %15 : vector<1x32xf32> to vector<8x32xf32>
    %405 = arith.addf %403, %404 : vector<8x32xf32>
    %c0_88 = arith.constant 0 : index
    %c0_89 = arith.constant 0 : index
    %c0_90 = arith.constant 0 : index
    %406 = vector.load %arg14[%c0_88, %c0_89, %c0_90] : memref<1x8x32xf32, #tpu.memory_space<vmem>>, vector<1x8x32xf32>
    %407 = vector.shape_cast %406 : vector<1x8x32xf32> to vector<8x32xf32>
    %408 = vector.shape_cast %405 : vector<8x32xf32> to vector<1x8x32xf32>
    tpu.vector_store %arg14[%c0_88, %c0_89, %c0_90], %408 {strides = array<i32>} : memref<1x8x32xf32, #tpu.memory_space<vmem>>, vector<1x8x32xf32>,
    %c0_91 = arith.constant 0 : index
    %c0_92 = arith.constant 0 : index
    %c0_93 = arith.constant 0 : index
    %409 = vector.load %arg15[%c0_91, %c0_92, %c0_93] : memref<1x8x2xf32, #tpu.memory_space<vmem>>, vector<1x8x2xf32>
    %410 = vector.shape_cast %409 : vector<1x8x2xf32> to vector<8x2xf32>
    %411 = vector.shape_cast %349 : vector<8x2xf32> to vector<1x8x2xf32>
    tpu.vector_store %arg15[%c0_91, %c0_92, %c0_93], %411 {strides = array<i32>} : memref<1x8x2xf32, #tpu.memory_space<vmem>>, vector<1x8x2xf32>,
    return
  }
  func.func @transform_0(%arg0: i32) -> (i32, i32, i32) {
    %c0_i32 = arith.constant 0 : i32
    %c0_i32_0 = arith.constant 0 : i32
    %c0_i32_1 = arith.constant 0 : i32
    return %arg0, %c0_i32, %c0_i32_0 : i32, i32, i32
  }
  func.func @transform_1(%arg0: i32) -> (i32, i32, i32) {
    %c0_i32 = arith.constant 0 : i32
    %c0_i32_0 = arith.constant 0 : i32
    %c0_i32_1 = arith.constant 0 : i32
    return %arg0, %c0_i32, %c0_i32_0 : i32, i32, i32
  }
  func.func @transform_2(%arg0: i32) -> (i32, i32, i32) {
    %c0_i32 = arith.constant 0 : i32
    %c0_i32_0 = arith.constant 0 : i32
    %c0_i32_1 = arith.constant 0 : i32
    return %arg0, %c0_i32, %c0_i32_0 : i32, i32, i32
  }
  func.func @transform_3(%arg0: i32) -> (i32, i32, i32) {
    %c0_i32 = arith.constant 0 : i32
    %c0_i32_0 = arith.constant 0 : i32
    %c0_i32_1 = arith.constant 0 : i32
    return %arg0, %c0_i32, %c0_i32_0 : i32, i32, i32
  }
  func.func @transform_4(%arg0: i32) -> (i32, i32, i32) {
    %c0_i32 = arith.constant 0 : i32
    %c0_i32_0 = arith.constant 0 : i32
    %c0_i32_1 = arith.constant 0 : i32
    return %arg0, %c0_i32, %c0_i32_0 : i32, i32, i32
  }
  func.func @transform_5(%arg0: i32) -> (i32, i32) {
    %c0_i32 = arith.constant 0 : i32
    %c0_i32_0 = arith.constant 0 : i32
    %c0_i32_1 = arith.constant 0 : i32
    return %c0_i32, %c0_i32_0 : i32, i32
  }
  func.func @transform_6(%arg0: i32) -> (i32, i32) {
    %c0_i32 = arith.constant 0 : i32
    %c0_i32_0 = arith.constant 0 : i32
    %c0_i32_1 = arith.constant 0 : i32
    return %c0_i32, %c0_i32_0 : i32, i32
  }
  func.func @transform_7(%arg0: i32) -> (i32, i32) {
    %c0_i32 = arith.constant 0 : i32
    %c0_i32_0 = arith.constant 0 : i32
    %c0_i32_1 = arith.constant 0 : i32
    return %c0_i32, %c0_i32_0 : i32, i32
  }
  func.func @transform_8(%arg0: i32) -> (i32, i32) {
    %c0_i32 = arith.constant 0 : i32
    %c0_i32_0 = arith.constant 0 : i32
    %c0_i32_1 = arith.constant 0 : i32
    return %c0_i32, %c0_i32_0 : i32, i32
  }
  func.func @transform_9(%arg0: i32) -> (i32, i32) {
    %c0_i32 = arith.constant 0 : i32
    %c0_i32_0 = arith.constant 0 : i32
    %c0_i32_1 = arith.constant 0 : i32
    return %c0_i32, %c0_i32_0 : i32, i32
  }
  func.func @transform_10(%arg0: i32) -> (i32, i32) {
    %c0_i32 = arith.constant 0 : i32
    %c0_i32_0 = arith.constant 0 : i32
    %c0_i32_1 = arith.constant 0 : i32
    return %c0_i32, %c0_i32_0 : i32, i32
  }
  func.func @transform_11(%arg0: i32) -> (i32, i32) {
    %c0_i32 = arith.constant 0 : i32
    %c0_i32_0 = arith.constant 0 : i32
    %c0_i32_1 = arith.constant 0 : i32
    return %c0_i32, %c0_i32_0 : i32, i32
  }
  func.func @transform_12(%arg0: i32) -> (i32, i32) {
    %c0_i32 = arith.constant 0 : i32
    %c0_i32_0 = arith.constant 0 : i32
    %c0_i32_1 = arith.constant 0 : i32
    return %c0_i32, %c0_i32_0 : i32, i32
  }
  func.func @transform_13(%arg0: i32) -> (i32, i32, i32) {
    %c0_i32 = arith.constant 0 : i32
    %c0_i32_0 = arith.constant 0 : i32
    %c0_i32_1 = arith.constant 0 : i32
    return %arg0, %c0_i32, %c0_i32_0 : i32, i32, i32
  }
  func.func @transform_14(%arg0: i32) -> (i32, i32, i32) {
    %c0_i32 = arith.constant 0 : i32
    %c0_i32_0 = arith.constant 0 : i32
    %c0_i32_1 = arith.constant 0 : i32
    return %arg0, %c0_i32, %c0_i32_0 : i32, i32, i32
  }
}

</mosaic_0001>

<llo_original>
// kernel: tpu_custom_call.1
$region0: #{tpu_custom_call.1}
  #allocation0 [shape = 'u32[]', space=smem, size = 0x4, offset = 0x4, fixed_abs, tag = 'smem constant byte address 0x4 - core index']
  #allocation1 [shape = 'u32[144,128]{1,0:T(1,128)}', space=vmem, size = 0x12000, scoped, tag = 'internal scratch']
  %s0 = inlined_call_operand.hbm [shape: f32[2,8,32], index: 0, kind: input, shape index: {}]
  %s1 = inlined_call_operand.vmem [shape: f32[2,12,32], index: 1, kind: input, shape index: {}]
  %s2 = inlined_call_operand.vmem [shape: f32[2,8,2], index: 2, kind: input, shape index: {}]
  %s3 = inlined_call_operand.vmem [shape: f32[2,12,2], index: 3, kind: input, shape index: {}]
  %s4 = inlined_call_operand.hbm [shape: f32[2,8,12], index: 4, kind: input, shape index: {}]
  %s5 = inlined_call_operand.vmem [shape: f32[32,32], index: 5, kind: input, shape index: {}]
  %s6 = inlined_call_operand.vmem [shape: f32[32,64], index: 6, kind: input, shape index: {}]
  %s7 = inlined_call_operand.vmem [shape: f32[32,32], index: 7, kind: input, shape index: {}]
  %s8 = inlined_call_operand.hbm [shape: f32[2,16], index: 8, kind: input, shape index: {}]
  %s9 = inlined_call_operand.vmem [shape: f32[16,2], index: 9, kind: input, shape index: {}]
  %s10 = inlined_call_operand.vmem [shape: f32[32,32], index: 10, kind: input, shape index: {}]
  %s11 = inlined_call_operand.vmem [shape: f32[32,32], index: 11, kind: input, shape index: {}]
  %s12 = inlined_call_operand.hbm [shape: f32[9,32], index: 12, kind: input, shape index: {}]
  %s13 = inlined_call_operand.hbm [shape: f32[2,8,32], index: 13, kind: output, shape index: {0}]
  %s14 = inlined_call_operand.vmem [shape: f32[2,8,2], index: 14, kind: output, shape index: {1}]
  %15 = xla_tuple %s13, %s14
  %s16 = sld [smem:[#allocation0]]
  $region109: #{tpu_custom_call.1} parent=0
    _
  %s18 = ssub.s32 1, %s16
  %s19 = scalar_select 0, %s18, %s16
  $region1: #{tpu_custom_call.1} parent=0
    #allocation2 [shape = 'u8[8192]{0}', space=vmem, size = 0x2000, scoped, tag = 'input window, operand 0']
    #allocation3 [shape = 's32[2]{0}', space=sflag, size = 0x8, scoped, tag = 'scoped memory for tpu_custom_call.1']
    #allocation4 [shape = 's32[2]{0}', space=sflag, size = 0x8, scoped, tag = 'scoped memory for tpu_custom_call.1']
    #allocation5 [shape = 'u8[8192]{0}', space=vmem, size = 0x2000, scoped, tag = 'input window, operand 4']
    #allocation6 [shape = 's32[2]{0}', space=sflag, size = 0x8, scoped, tag = 'scoped memory for tpu_custom_call.1']
    #allocation7 [shape = 'u8[1024]{0}', space=vmem, size = 0x400, scoped, tag = 'input window, operand 8, single buffered']
    #allocation8 [shape = 'u8[8192]{0}', space=vmem, size = 0x2000, scoped, tag = 'input window, operand 12, single buffered']
    #allocation9 [shape = 's32[1]{0}', space=sflag, size = 0x4, scoped, tag = 'scoped memory for tpu_custom_call.1']
    #allocation10 [shape = 'u8[8192]{0}', space=vmem, size = 0x2000, scoped, tag = 'output window, operand 0']
    %20 = vsyncpa [#allocation3], 0
    %s21 = scalar_lea.sflag [#allocation3], 1
    %22 = vsyncpa %s21, 0
    %23 = vsyncpa [#allocation6], 0
    %s24 = scalar_lea.sflag [#allocation6], 1
    %25 = vsyncpa %s24, 0
    %26 = vsyncpa [#allocation9], 0
    %27 = vsyncpa [#allocation4], 0
    %s28 = scalar_lea.sflag [#allocation4], 1
    %29 = vsyncpa %s28, 0
    loop: start=0, step=1, limit=4
    $region2: #{tpu_custom_call.1} parent=1 // loop_pre_header
      _
    $region3: #{tpu_custom_call.1} parent=1 // loop_header
      %s31 = sphi 0, %s35
      %p32 = scmp.ge.s32.totalorder %s31, 4
      %s41 = sphi 0, %s43
      %s44 = sphi 0, %s41
      %s45 = sphi 0, %s44
      %s61 = sphi 0, %s45
      %s67 = sphi 0, %s69
      %s70 = sphi 0, %s67
      %s71 = sphi 0, %s70
      %s87 = sphi 0, %s71
      %s93 = sphi 0, %s95
      %s96 = sphi 0, %s93
      %s97 = sphi 0, %s96
      %s113 = sphi 0, %s97
      %s119 = sphi 0, %s121
      %s122 = sphi 0, %s119
      %s123 = sphi 0, %s122
      %s139 = sphi 0, %s123
      %s145 = sphi 0, %s147
      %s148 = sphi 0, %s145
      %s149 = sphi 0, %s148
      %s165 = sphi 0, %s149
      %s169 = sphi 0, %s169
      %s171 = sphi 0, %s169
      %s172 = sphi 0, %s171
      %s186 = sphi 0, %s172
      %s190 = sphi 0, %s190
      %s192 = sphi 0, %s190
      %s193 = sphi 0, %s192
      %s207 = sphi 0, %s193
      %s211 = sphi 0, %s211
      %s213 = sphi 0, %s211
      %s214 = sphi 0, %s213
      %s228 = sphi 0, %s214
      %s232 = sphi 0, %s232
      %s234 = sphi 0, %s232
      %s235 = sphi 0, %s234
      %s249 = sphi 0, %s235
      %s253 = sphi 0, %s253
      %s255 = sphi 0, %s253
      %s256 = sphi 0, %s255
      %s270 = sphi 0, %s256
      %s274 = sphi 0, %s274
      %s276 = sphi 0, %s274
      %s277 = sphi 0, %s276
      %s291 = sphi 0, %s277
      %s295 = sphi 0, %s295
      %s297 = sphi 0, %s295
      %s298 = sphi 0, %s297
      %s312 = sphi 0, %s298
      %s316 = sphi 0, %s316
      %s318 = sphi 0, %s316
      %s319 = sphi 0, %s318
      %s333 = sphi 0, %s319
      %s339 = sphi 0, %s341
      %s342 = sphi 0, %s339
      %s343 = sphi 0, %s342
      %s359 = sphi 0, %s343
      %s365 = sphi 0, %s367
      %s368 = sphi 0, %s365
      %s369 = sphi 0, %s368
      %s385 = sphi 0, %s369
    $region4: #{tpu_custom_call.1} parent=1 // loop_header_branch
      %34 = sbr.rel (%p32) target = $region8
    $region5: #{tpu_custom_call.1} parent=1 // loop_body
      %s36 = ssub.s32 %s31, 1
      %s37 = ssub.s32 %s31, 2
      %s38 = sadd.s32 %s31, 1
      %s39 = ssub.s32 %s31, %s38
      %p40 = scmp.eq.s32.totalorder %s39, 0
      %s42 = sadd.s32 %s41, 1
      %s43 = scalar_select %p40, %s41, %s42
      %p46 = pneg %p40
      %p47 = scmp.eq.s32.totalorder %s31, 1
      %p48 = por %p46, %p47
      %p49 = scmp.ne.s32.totalorder %s41, %s44
      %p50 = scmp.eq.s32.totalorder %s31, 0
      %p51 = por %p49, %p50
      %p52 = scmp.ne.s32.totalorder %s41, %s44
      %p53 = scmp.eq.s32.totalorder %s36, 1
      %p54 = por %p52, %p53
      %p55 = scmp.ne.s32.totalorder %s44, %s45
      %p56 = scmp.eq.s32.totalorder %s36, 0
      %p57 = por %p55, %p56
      %p58 = scmp.ne.s32.totalorder %s44, %s45
      %p59 = scmp.eq.s32.totalorder %s37, 1
      %p60 = por %p58, %p59
      %p62 = scmp.ne.s32.totalorder %s45, %s61
      %p63 = scmp.eq.s32.totalorder %s37, 0
      %p64 = por %p62, %p63
      %s65 = ssub.s32 %s31, %s38
      %p66 = scmp.eq.s32.totalorder %s65, 0
      %s68 = sadd.s32 %s67, 1
      %s69 = scalar_select %p66, %s67, %s68
      %p72 = pneg %p66
      %p73 = scmp.eq.s32.totalorder %s31, 1
      %p74 = por %p72, %p73
      %p75 = scmp.ne.s32.totalorder %s67, %s70
      %p76 = scmp.eq.s32.totalorder %s31, 0
      %p77 = por %p75, %p76
      %p78 = scmp.ne.s32.totalorder %s67, %s70
      %p79 = scmp.eq.s32.totalorder %s36, 1
      %p80 = por %p78, %p79
      %p81 = scmp.ne.s32.totalorder %s70, %s71
      %p82 = scmp.eq.s32.totalorder %s36, 0
      %p83 = por %p81, %p82
      %p84 = scmp.ne.s32.totalorder %s70, %s71
      %p85 = scmp.eq.s32.totalorder %s37, 1
      %p86 = por %p84, %p85
      %p88 = scmp.ne.s32.totalorder %s71, %s87
      %p89 = scmp.eq.s32.totalorder %s37, 0
      %p90 = por %p88, %p89
      %s91 = ssub.s32 %s31, %s38
      %p92 = scmp.eq.s32.totalorder %s91, 0
      %s94 = sadd.s32 %s93, 1
      %s95 = scalar_select %p92, %s93, %s94
      %p98 = pneg %p92
      %p99 = scmp.eq.s32.totalorder %s31, 1
      %p100 = por %p98, %p99
      %p101 = scmp.ne.s32.totalorder %s93, %s96
      %p102 = scmp.eq.s32.totalorder %s31, 0
      %p103 = por %p101, %p102
      %p104 = scmp.ne.s32.totalorder %s93, %s96
      %p105 = scmp.eq.s32.totalorder %s36, 1
      %p106 = por %p104, %p105
      %p107 = scmp.ne.s32.totalorder %s96, %s97
      %p108 = scmp.eq.s32.totalorder %s36, 0
      %p109 = por %p107, %p108
      %p110 = scmp.ne.s32.totalorder %s96, %s97
      %p111 = scmp.eq.s32.totalorder %s37, 1
      %p112 = por %p110, %p111
      %p114 = scmp.ne.s32.totalorder %s97, %s113
      %p115 = scmp.eq.s32.totalorder %s37, 0
      %p116 = por %p114, %p115
      %s117 = ssub.s32 %s31, %s38
      %p118 = scmp.eq.s32.totalorder %s117, 0
      %s120 = sadd.s32 %s119, 1
      %s121 = scalar_select %p118, %s119, %s120
      %p124 = pneg %p118
      %p125 = scmp.eq.s32.totalorder %s31, 1
      %p126 = por %p124, %p125
      %p127 = scmp.ne.s32.totalorder %s119, %s122
      %p128 = scmp.eq.s32.totalorder %s31, 0
      %p129 = por %p127, %p128
      %p130 = scmp.ne.s32.totalorder %s119, %s122
      %p131 = scmp.eq.s32.totalorder %s36, 1
      %p132 = por %p130, %p131
      %p133 = scmp.ne.s32.totalorder %s122, %s123
      %p134 = scmp.eq.s32.totalorder %s36, 0
      %p135 = por %p133, %p134
      %p136 = scmp.ne.s32.totalorder %s122, %s123
      %p137 = scmp.eq.s32.totalorder %s37, 1
      %p138 = por %p136, %p137
      %p140 = scmp.ne.s32.totalorder %s123, %s139
      %p141 = scmp.eq.s32.totalorder %s37, 0
      %p142 = por %p140, %p141
      %s143 = ssub.s32 %s31, %s38
      %p144 = scmp.eq.s32.totalorder %s143, 0
      %s146 = sadd.s32 %s145, 1
      %s147 = scalar_select %p144, %s145, %s146
      %p150 = pneg %p144
      %p151 = scmp.eq.s32.totalorder %s31, 1
      %p152 = por %p150, %p151
      %p153 = scmp.ne.s32.totalorder %s145, %s148
      %p154 = scmp.eq.s32.totalorder %s31, 0
      %p155 = por %p153, %p154
      %p156 = scmp.ne.s32.totalorder %s145, %s148
      %p157 = scmp.eq.s32.totalorder %s36, 1
      %p158 = por %p156, %p157
      %p159 = scmp.ne.s32.totalorder %s148, %s149
      %p160 = scmp.eq.s32.totalorder %s36, 0
      %p161 = por %p159, %p160
      %p162 = scmp.ne.s32.totalorder %s148, %s149
      %p163 = scmp.eq.s32.totalorder %s37, 1
      %p164 = por %p162, %p163
      %p166 = scmp.ne.s32.totalorder %s149, %s165
      %p167 = scmp.eq.s32.totalorder %s37, 0
      %p168 = por %p166, %p167
      %s170 = sadd.s32 %s169, 1
      %p173 = scmp.eq.s32.totalorder %s31, 1
      %p174 = scmp.ne.s32.totalorder %s169, %s171
      %p175 = scmp.eq.s32.totalorder %s31, 0
      %p176 = por %p174, %p175
      %p177 = scmp.ne.s32.totalorder %s169, %s171
      %p178 = scmp.eq.s32.totalorder %s36, 1
      %p179 = por %p177, %p178
      %p180 = scmp.ne.s32.totalorder %s171, %s172
      %p181 = scmp.eq.s32.totalorder %s36, 0
      %p182 = por %p180, %p181
      %p183 = scmp.ne.s32.totalorder %s171, %s172
      %p184 = scmp.eq.s32.totalorder %s37, 1
      %p185 = por %p183, %p184
      %p187 = scmp.ne.s32.totalorder %s172, %s186
      %p188 = scmp.eq.s32.totalorder %s37, 0
      %p189 = por %p187, %p188
      %s191 = sadd.s32 %s190, 1
      %p194 = scmp.eq.s32.totalorder %s31, 1
      %p195 = scmp.ne.s32.totalorder %s190, %s192
      %p196 = scmp.eq.s32.totalorder %s31, 0
      %p197 = por %p195, %p196
      %p198 = scmp.ne.s32.totalorder %s190, %s192
      %p199 = scmp.eq.s32.totalorder %s36, 1
      %p200 = por %p198, %p199
      %p201 = scmp.ne.s32.totalorder %s192, %s193
      %p202 = scmp.eq.s32.totalorder %s36, 0
      %p203 = por %p201, %p202
      %p204 = scmp.ne.s32.totalorder %s192, %s193
      %p205 = scmp.eq.s32.totalorder %s37, 1
      %p206 = por %p204, %p205
      %p208 = scmp.ne.s32.totalorder %s193, %s207
      %p209 = scmp.eq.s32.totalorder %s37, 0
      %p210 = por %p208, %p209
      %s212 = sadd.s32 %s211, 1
      %p215 = scmp.eq.s32.totalorder %s31, 1
      %p216 = scmp.ne.s32.totalorder %s211, %s213
      %p217 = scmp.eq.s32.totalorder %s31, 0
      %p218 = por %p216, %p217
      %p219 = scmp.ne.s32.totalorder %s211, %s213
      %p220 = scmp.eq.s32.totalorder %s36, 1
      %p221 = por %p219, %p220
      %p222 = scmp.ne.s32.totalorder %s213, %s214
      %p223 = scmp.eq.s32.totalorder %s36, 0
      %p224 = por %p222, %p223
      %p225 = scmp.ne.s32.totalorder %s213, %s214
      %p226 = scmp.eq.s32.totalorder %s37, 1
      %p227 = por %p225, %p226
      %p229 = scmp.ne.s32.totalorder %s214, %s228
      %p230 = scmp.eq.s32.totalorder %s37, 0
      %p231 = por %p229, %p230
      %s233 = sadd.s32 %s232, 1
      %p236 = scmp.eq.s32.totalorder %s31, 1
      %p237 = scmp.ne.s32.totalorder %s232, %s234
      %p238 = scmp.eq.s32.totalorder %s31, 0
      %p239 = por %p237, %p238
      %p240 = scmp.ne.s32.totalorder %s232, %s234
      %p241 = scmp.eq.s32.totalorder %s36, 1
      %p242 = por %p240, %p241
      %p243 = scmp.ne.s32.totalorder %s234, %s235
      %p244 = scmp.eq.s32.totalorder %s36, 0
      %p245 = por %p243, %p244
      %p246 = scmp.ne.s32.totalorder %s234, %s235
      %p247 = scmp.eq.s32.totalorder %s37, 1
      %p248 = por %p246, %p247
      %p250 = scmp.ne.s32.totalorder %s235, %s249
      %p251 = scmp.eq.s32.totalorder %s37, 0
      %p252 = por %p250, %p251
      %s254 = sadd.s32 %s253, 1
      %p257 = scmp.eq.s32.totalorder %s31, 1
      %p258 = scmp.ne.s32.totalorder %s253, %s255
      %p259 = scmp.eq.s32.totalorder %s31, 0
      %p260 = por %p258, %p259
      %p261 = scmp.ne.s32.totalorder %s253, %s255
      %p262 = scmp.eq.s32.totalorder %s36, 1
      %p263 = por %p261, %p262
      %p264 = scmp.ne.s32.totalorder %s255, %s256
      %p265 = scmp.eq.s32.totalorder %s36, 0
      %p266 = por %p264, %p265
      %p267 = scmp.ne.s32.totalorder %s255, %s256
      %p268 = scmp.eq.s32.totalorder %s37, 1
      %p269 = por %p267, %p268
      %p271 = scmp.ne.s32.totalorder %s256, %s270
      %p272 = scmp.eq.s32.totalorder %s37, 0
      %p273 = por %p271, %p272
      %s275 = sadd.s32 %s274, 1
      %p278 = scmp.eq.s32.totalorder %s31, 1
      %p279 = scmp.ne.s32.totalorder %s274, %s276
      %p280 = scmp.eq.s32.totalorder %s31, 0
      %p281 = por %p279, %p280
      %p282 = scmp.ne.s32.totalorder %s274, %s276
      %p283 = scmp.eq.s32.totalorder %s36, 1
      %p284 = por %p282, %p283
      %p285 = scmp.ne.s32.totalorder %s276, %s277
      %p286 = scmp.eq.s32.totalorder %s36, 0
      %p287 = por %p285, %p286
      %p288 = scmp.ne.s32.totalorder %s276, %s277
      %p289 = scmp.eq.s32.totalorder %s37, 1
      %p290 = por %p288, %p289
      %p292 = scmp.ne.s32.totalorder %s277, %s291
      %p293 = scmp.eq.s32.totalorder %s37, 0
      %p294 = por %p292, %p293
      %s296 = sadd.s32 %s295, 1
      %p299 = scmp.eq.s32.totalorder %s31, 1
      %p300 = scmp.ne.s32.totalorder %s295, %s297
      %p301 = scmp.eq.s32.totalorder %s31, 0
      %p302 = por %p300, %p301
      %p303 = scmp.ne.s32.totalorder %s295, %s297
      %p304 = scmp.eq.s32.totalorder %s36, 1
      %p305 = por %p303, %p304
      %p306 = scmp.ne.s32.totalorder %s297, %s298
      %p307 = scmp.eq.s32.totalorder %s36, 0
      %p308 = por %p306, %p307
      %p309 = scmp.ne.s32.totalorder %s297, %s298
      %p310 = scmp.eq.s32.totalorder %s37, 1
      %p311 = por %p309, %p310
      %p313 = scmp.ne.s32.totalorder %s298, %s312
      %p314 = scmp.eq.s32.totalorder %s37, 0
      %p315 = por %p313, %p314
      %s317 = sadd.s32 %s316, 1
      %p320 = scmp.eq.s32.totalorder %s31, 1
      %p321 = scmp.ne.s32.totalorder %s316, %s318
      %p322 = scmp.eq.s32.totalorder %s31, 0
      %p323 = por %p321, %p322
      %p324 = scmp.ne.s32.totalorder %s316, %s318
      %p325 = scmp.eq.s32.totalorder %s36, 1
      %p326 = por %p324, %p325
      %p327 = scmp.ne.s32.totalorder %s318, %s319
      %p328 = scmp.eq.s32.totalorder %s36, 0
      %p329 = por %p327, %p328
      %p330 = scmp.ne.s32.totalorder %s318, %s319
      %p331 = scmp.eq.s32.totalorder %s37, 1
      %p332 = por %p330, %p331
      %p334 = scmp.ne.s32.totalorder %s319, %s333
      %p335 = scmp.eq.s32.totalorder %s37, 0
      %p336 = por %p334, %p335
      %s337 = ssub.s32 %s31, %s38
      %p338 = scmp.eq.s32.totalorder %s337, 0
      %s340 = sadd.s32 %s339, 1
      %s341 = scalar_select %p338, %s339, %s340
      %p344 = pneg %p338
      %p345 = scmp.eq.s32.totalorder %s31, 1
      %p346 = por %p344, %p345
      %p347 = scmp.ne.s32.totalorder %s339, %s342
      %p348 = scmp.eq.s32.totalorder %s31, 0
      %p349 = por %p347, %p348
      %p350 = scmp.ne.s32.totalorder %s339, %s342
      %p351 = scmp.eq.s32.totalorder %s36, 1
      %p352 = por %p350, %p351
      %p353 = scmp.ne.s32.totalorder %s342, %s343
      %p354 = scmp.eq.s32.totalorder %s36, 0
      %p355 = por %p353, %p354
      %p356 = scmp.ne.s32.totalorder %s342, %s343
      %p357 = scmp.eq.s32.totalorder %s37, 1
      %p358 = por %p356, %p357
      %p360 = scmp.ne.s32.totalorder %s343, %s359
      %p361 = scmp.eq.s32.totalorder %s37, 0
      %p362 = por %p360, %p361
      %s363 = ssub.s32 %s31, %s38
      %p364 = scmp.eq.s32.totalorder %s363, 0
      %s366 = sadd.s32 %s365, 1
      %s367 = scalar_select %p364, %s365, %s366
      %p370 = pneg %p364
      %p371 = scmp.eq.s32.totalorder %s31, 1
      %p372 = por %p370, %p371
      %p373 = scmp.ne.s32.totalorder %s365, %s368
      %p374 = scmp.eq.s32.totalorder %s31, 0
      %p375 = por %p373, %p374
      %p376 = scmp.ne.s32.totalorder %s365, %s368
      %p377 = scmp.eq.s32.totalorder %s36, 1
      %p378 = por %p376, %p377
      %p379 = scmp.ne.s32.totalorder %s368, %s369
      %p380 = scmp.eq.s32.totalorder %s36, 0
      %p381 = por %p379, %p380
      %p382 = scmp.ne.s32.totalorder %s368, %s369
      %p383 = scmp.eq.s32.totalorder %s37, 1
      %p384 = por %p382, %p383
      %p386 = scmp.ne.s32.totalorder %s369, %s385
      %p387 = scmp.eq.s32.totalorder %s37, 0
      %p388 = por %p386, %p387
      %p389 = scmp.le.s32.totalorder 1, %s31
      %p390 = scmp.lt.s32.totalorder %s31, 3
      %p391 = pnand %p389, %p390
      %p392 = pneg %p391
      // Predicated region
      $region9: #{tpu_custom_call.1} parent=5 // pred_check
        _
      $region10: #{tpu_custom_call.1} parent=5 // pred_check_branch
        %394 = sbr.rel (%p391) target = $region12
      $region11: #{tpu_custom_call.1} parent=5 // pred_region
        %s395 = ssub.s32 %s31, 1
        // Predicated region
        $region13: #{tpu_custom_call.1} parent=11 // pred_check
          %p396 = pneg %p182
        $region14: #{tpu_custom_call.1} parent=11 // pred_check_branch
          %398 = sbr.rel (%p396) target = $region16
        $region15: #{tpu_custom_call.1} parent=11 // pred_region
          _
        $region16: #{tpu_custom_call.1} parent=11 // pred_fallthru
          _
        // Predicated region
        $region17: #{tpu_custom_call.1} parent=11 // pred_check
          %p399 = pneg %p203
        $region18: #{tpu_custom_call.1} parent=11 // pred_check_branch
          %401 = sbr.rel (%p399) target = $region20
        $region19: #{tpu_custom_call.1} parent=11 // pred_region
          _
        $region20: #{tpu_custom_call.1} parent=11 // pred_fallthru
          _
        // Predicated region
        $region21: #{tpu_custom_call.1} parent=11 // pred_check
          %p402 = pneg %p224
        $region22: #{tpu_custom_call.1} parent=11 // pred_check_branch
          %404 = sbr.rel (%p402) target = $region24
        $region23: #{tpu_custom_call.1} parent=11 // pred_region
          _
        $region24: #{tpu_custom_call.1} parent=11 // pred_fallthru
          _
        // Predicated region
        $region25: #{tpu_custom_call.1} parent=11 // pred_check
          %p405 = pneg %p245
        $region26: #{tpu_custom_call.1} parent=11 // pred_check_branch
          %407 = sbr.rel (%p405) target = $region28
        $region27: #{tpu_custom_call.1} parent=11 // pred_region
          %s409 = ssub.s32 32, 32
          %410 = vsyncadd [#allocation6], %s409
          %s412 = sshll.u32 [#allocation7], 4
          %s413 = int_to_ptr.vmem [resolvable:$true] %s412
          %415 = dma.hbm_to_vmem [thread:$0]  %s8, 32, %s413, [#allocation6]
        $region28: #{tpu_custom_call.1} parent=11 // pred_fallthru
          _
        // Predicated region
        $region29: #{tpu_custom_call.1} parent=11 // pred_check
          %p416 = pneg %p266
        $region30: #{tpu_custom_call.1} parent=11 // pred_check_branch
          %418 = sbr.rel (%p416) target = $region32
        $region31: #{tpu_custom_call.1} parent=11 // pred_region
          _
        $region32: #{tpu_custom_call.1} parent=11 // pred_fallthru
          _
        // Predicated region
        $region33: #{tpu_custom_call.1} parent=11 // pred_check
          %p419 = pneg %p287
        $region34: #{tpu_custom_call.1} parent=11 // pred_check_branch
          %421 = sbr.rel (%p419) target = $region36
        $region35: #{tpu_custom_call.1} parent=11 // pred_region
          _
        $region36: #{tpu_custom_call.1} parent=11 // pred_fallthru
          _
        // Predicated region
        $region37: #{tpu_custom_call.1} parent=11 // pred_check
          %p422 = pneg %p308
        $region38: #{tpu_custom_call.1} parent=11 // pred_check_branch
          %424 = sbr.rel (%p422) target = $region40
        $region39: #{tpu_custom_call.1} parent=11 // pred_region
          _
        $region40: #{tpu_custom_call.1} parent=11 // pred_fallthru
          _
        // Predicated region
        $region41: #{tpu_custom_call.1} parent=11 // pred_check
          %p425 = pneg %p329
        $region42: #{tpu_custom_call.1} parent=11 // pred_check_branch
          %427 = sbr.rel (%p425) target = $region44
        $region43: #{tpu_custom_call.1} parent=11 // pred_region
          %s429 = ssub.s32 256, 256
          %430 = vsyncadd [#allocation9], %s429
          %s431 = sshll.u32 [#allocation8], 4
          %s432 = int_to_ptr.vmem [resolvable:$true] %s431
          %437 = dma.hbm_to_vmem [thread:$0]  %s12, 256, %s432, [#allocation9], 128, 128, 8
        $region44: #{tpu_custom_call.1} parent=11 // pred_fallthru
          _
      $region12: #{tpu_custom_call.1} parent=5 // pred_fallthru
        _
      %p438 = scmp.lt.s32.totalorder %s31, 2
      // Predicated region
      $region45: #{tpu_custom_call.1} parent=5 // pred_check
        %p439 = pneg %p438
      $region46: #{tpu_custom_call.1} parent=5 // pred_check_branch
        %441 = sbr.rel (%p439) target = $region48
      $region47: #{tpu_custom_call.1} parent=5 // pred_region
        // Predicated region
        $region49: #{tpu_custom_call.1} parent=47 // pred_check
          %p442 = pneg %p51
        $region50: #{tpu_custom_call.1} parent=47 // pred_check_branch
          %444 = sbr.rel (%p442) target = $region52
        $region51: #{tpu_custom_call.1} parent=47 // pred_region
          %s445 = sand.u32 %s41, 1
          %s446 = scalar_lea.sflag [#allocation3], %s445
          %s447 = sand.u32 %s41, 1
          %s448 = smul.addr %s447, 8
          %s449 = scalar_lea.vmem [#allocation2], %s448
          %s451 = ssub.s32 128, 128
          %452 = vsyncadd %s446, %s451
          %s453 = smul.addr %s31, 128
          %s454 = scalar_lea.hbm %s0, %s453
          %s456 = sshll.u32 %s449, 4
          %s457 = int_to_ptr.vmem [resolvable:$true] %s456
          %459 = dma.hbm_to_vmem [thread:$0]  %s454, 128, %s457, %s446
        $region52: #{tpu_custom_call.1} parent=47 // pred_fallthru
          _
        // Predicated region
        $region53: #{tpu_custom_call.1} parent=47 // pred_check
          %p460 = pneg %p77
        $region54: #{tpu_custom_call.1} parent=47 // pred_check_branch
          %462 = sbr.rel (%p460) target = $region56
        $region55: #{tpu_custom_call.1} parent=47 // pred_region
          %p463 = scmp.lt.s32.totalorder %s31, 1
          %s464 = scalar_select %p463, %s31, 1
          %s465 = smul.addr %s464, 2
          %s466 = smul.addr %s465, 8
          %s467 = scalar_lea.vmem %s1, %s466
        $region56: #{tpu_custom_call.1} parent=47 // pred_fallthru
          _
        // Predicated region
        $region57: #{tpu_custom_call.1} parent=47 // pred_check
          %p468 = pneg %p103
        $region58: #{tpu_custom_call.1} parent=47 // pred_check_branch
          %470 = sbr.rel (%p468) target = $region60
        $region59: #{tpu_custom_call.1} parent=47 // pred_region
          %p471 = scmp.lt.s32.totalorder %s31, 1
          %s472 = scalar_select %p471, %s31, 1
          %s473 = smul.addr %s472, 8
          %s474 = scalar_lea.vmem %s2, %s473
        $region60: #{tpu_custom_call.1} parent=47 // pred_fallthru
          _
        // Predicated region
        $region61: #{tpu_custom_call.1} parent=47 // pred_check
          %p475 = pneg %p129
        $region62: #{tpu_custom_call.1} parent=47 // pred_check_branch
          %477 = sbr.rel (%p475) target = $region64
        $region63: #{tpu_custom_call.1} parent=47 // pred_region
          %p478 = scmp.lt.s32.totalorder %s31, 1
          %s479 = scalar_select %p478, %s31, 1
          %s480 = smul.addr %s479, 2
          %s481 = smul.addr %s480, 8
          %s482 = scalar_lea.vmem %s3, %s481
        $region64: #{tpu_custom_call.1} parent=47 // pred_fallthru
          _
        // Predicated region
        $region65: #{tpu_custom_call.1} parent=47 // pred_check
          %p483 = pneg %p155
        $region66: #{tpu_custom_call.1} parent=47 // pred_check_branch
          %485 = sbr.rel (%p483) target = $region68
        $region67: #{tpu_custom_call.1} parent=47 // pred_region
          %s486 = sand.u32 %s31, 1
          %s487 = scalar_lea.sflag [#allocation6], %s486
          %s488 = sand.u32 %s145, 1
          %s489 = smul.addr %s488, 8
          %s490 = scalar_lea.vmem [#allocation5], %s489
          %s492 = ssub.s32 128, 128
          %493 = vsyncadd %s487, %s492
          %s494 = smul.addr %s31, 128
          %s495 = scalar_lea.hbm %s4, %s494
          %s497 = sshll.u32 %s490, 4
          %s498 = int_to_ptr.vmem [resolvable:$true] %s497
          %500 = dma.hbm_to_vmem [thread:$0]  %s495, 128, %s498, %s487
        $region68: #{tpu_custom_call.1} parent=47 // pred_fallthru
          _
      $region48: #{tpu_custom_call.1} parent=5 // pred_fallthru
        _
      %p501 = scmp.le.s32.totalorder 1, %s31
      %p502 = scmp.lt.s32.totalorder %s31, 3
      %p503 = pnand %p501, %p502
      %p504 = pneg %p503
      // Predicated region
      $region69: #{tpu_custom_call.1} parent=5 // pred_check
        _
      $region70: #{tpu_custom_call.1} parent=5 // pred_check_branch
        %506 = sbr.rel (%p503) target = $region72
      $region71: #{tpu_custom_call.1} parent=5 // pred_region
        %s507 = ssub.s32 %s31, 1
        %s508 = sand.u32 %s44, 1
        %s509 = scalar_lea.sflag [#allocation3], %s508
        %s510 = sand.u32 %s44, 1
        %s511 = smul.addr %s510, 8
        %s512 = scalar_lea.vmem [#allocation2], %s511
        // Predicated region
        $region73: #{tpu_custom_call.1} parent=71 // pred_check
          %p513 = pneg %p57
        $region74: #{tpu_custom_call.1} parent=71 // pred_check_branch
          %515 = sbr.rel (%p513) target = $region76
        $region75: #{tpu_custom_call.1} parent=71 // pred_region
          %516 = dma.done %s509, 128
        $region76: #{tpu_custom_call.1} parent=71 // pred_fallthru
          _
        %s517 = sand.u32 %s36, 1
        %s518 = scalar_lea.sflag [#allocation6], %s517
        %s519 = sand.u32 %s148, 1
        %s520 = smul.addr %s519, 8
        %s521 = scalar_lea.vmem [#allocation5], %s520
        // Predicated region
        $region77: #{tpu_custom_call.1} parent=71 // pred_check
          %p522 = pneg %p161
        $region78: #{tpu_custom_call.1} parent=71 // pred_check_branch
          %524 = sbr.rel (%p522) target = $region80
        $region79: #{tpu_custom_call.1} parent=71 // pred_region
          %525 = dma.done %s518, 128
        $region80: #{tpu_custom_call.1} parent=71 // pred_fallthru
          _
        // Predicated region
        $region81: #{tpu_custom_call.1} parent=71 // pred_check
          %p526 = pneg %p245
        $region82: #{tpu_custom_call.1} parent=71 // pred_check_branch
          %528 = sbr.rel (%p526) target = $region84
        $region83: #{tpu_custom_call.1} parent=71 // pred_region
          %529 = dma.done [#allocation6], 32
        $region84: #{tpu_custom_call.1} parent=71 // pred_fallthru
          _
        // Predicated region
        $region85: #{tpu_custom_call.1} parent=71 // pred_check
          %p530 = pneg %p329
        $region86: #{tpu_custom_call.1} parent=71 // pred_check_branch
          %532 = sbr.rel (%p530) target = $region88
        $region87: #{tpu_custom_call.1} parent=71 // pred_region
          %533 = dma.done [#allocation9], 256
        $region88: #{tpu_custom_call.1} parent=71 // pred_fallthru
          _
        %s534 = sand.u32 %s44, 1
        %s535 = scalar_lea.sflag [#allocation3], %s534
        %s536 = sand.u32 %s44, 1
        %s537 = smul.addr %s536, 8
        %s538 = scalar_lea.vmem [#allocation2], %s537
        %p539 = pneg %p57
        %p540 = pneg %p54
        %p541 = scmp.lt.s32.totalorder %s36, 1
        %s542 = scalar_select %p541, %s36, 1
        %s543 = smul.addr %s542, 2
        %s544 = smul.addr %s543, 8
        %s545 = scalar_lea.vmem %s1, %s544
        %p546 = pneg %p83
        %p547 = pneg %p80
        %p548 = scmp.lt.s32.totalorder %s36, 1
        %s549 = scalar_select %p548, %s36, 1
        %s550 = smul.addr %s549, 8
        %s551 = scalar_lea.vmem %s2, %s550
        %p552 = pneg %p109
        %p553 = pneg %p106
        %p554 = scmp.lt.s32.totalorder %s36, 1
        %s555 = scalar_select %p554, %s36, 1
        %s556 = smul.addr %s555, 2
        %s557 = smul.addr %s556, 8
        %s558 = scalar_lea.vmem %s3, %s557
        %p559 = pneg %p135
        %p560 = pneg %p132
        %s561 = sand.u32 %s36, 1
        %s562 = scalar_lea.sflag [#allocation6], %s561
        %s563 = sand.u32 %s148, 1
        %s564 = smul.addr %s563, 8
        %s565 = scalar_lea.vmem [#allocation5], %s564
        %p566 = pneg %p161
        %p567 = pneg %p158
        %p568 = pneg %p182
        %p569 = pneg %p179
        %p570 = pneg %p203
        %p571 = pneg %p200
        %p572 = pneg %p224
        %p573 = pneg %p221
        %p574 = pneg %p245
        %p575 = pneg %p242
        %p576 = pneg %p266
        %p577 = pneg %p263
        %p578 = pneg %p287
        %p579 = pneg %p284
        %p580 = pneg %p308
        %p581 = pneg %p305
        %p582 = pneg %p329
        %p583 = pneg %p326
        %p584 = pneg %p355
        %p585 = pneg %p352
        %s586 = sand.u32 %s342, 1
        %s587 = scalar_lea.sflag [#allocation4], %s586
        %s588 = sand.u32 %s342, 1
        %s589 = smul.addr %s588, 8
        %s590 = scalar_lea.vmem [#allocation10], %s589
        %p591 = pneg %p381
        %p592 = pneg %p378
        %p593 = scmp.lt.s32.totalorder %s36, 1
        %s594 = scalar_select %p593, %s36, 1
        %s595 = smul.addr %s594, 8
        %s596 = scalar_lea.vmem %s14, %s595
        %p597 = scmp.lt.s32.totalorder %s36, 1
        %s598 = scalar_select %p597, %s36, 1
        %s599 = smul.addr %s598, 2
        %s600 = smul.addr %s599, 8
        %s601 = scalar_lea.vmem %s1, %s600
        %p602 = scmp.lt.s32.totalorder %s36, 1
        %s603 = scalar_select %p602, %s36, 1
        %s604 = smul.addr %s603, 8
        %s605 = scalar_lea.vmem %s2, %s604
        %p606 = scmp.lt.s32.totalorder %s36, 1
        %s607 = scalar_select %p606, %s36, 1
        %s608 = smul.addr %s607, 2
        %s609 = smul.addr %s608, 8
        %s610 = scalar_lea.vmem %s3, %s609
        %p611 = scmp.lt.s32.totalorder %s36, 1
        %s612 = scalar_select %p611, %s36, 1
        %s613 = smul.addr %s612, 8
        %s614 = scalar_lea.vmem %s14, %s613
        %v615 = vld [vmem:[%s512] sm:$0xff]
        %v616 = vld [vmem:[%s601] sm:$0xff]
        %v617 = vld [vmem:[%s601 + $0x8] sm:$0xf]
        %v618 = vld [vmem:[%s605] sm:$0xff]
        %v619 = vld [vmem:[%s610] sm:$0xff]
        %v620 = vld [vmem:[%s610 + $0x8] sm:$0xf]
        %v621 = vld [vmem:[%s521] sm:$0xff]
        %v622 = vld [vmem:[#allocation8] sm:$0x1]
        %v623 = vld [vmem:[#allocation8 + $0x1] sm:$0x1]
        %v624 = vld [vmem:[#allocation8 + $0x3] sm:$0x1]
        %v625 = vld [vmem:[#allocation8 + $0x4] sm:$0x1]
        %v626 = vld [vmem:[#allocation8 + $0x5] sm:$0x1]
        %v627 = vld [vmem:[#allocation8 + $0x6] sm:$0x1]
        %v628 = vld [vmem:[#allocation8 + $0x7] sm:$0x1]
        %v629 = vld [vmem:[#allocation8 + $0x8] sm:$0x1]
        %v630 = vld [vmem:[%s5] sm:$0xff]
        %v631 = vld [vmem:[%s5 + $0x8] sm:$0xff]
        %v632 = vld [vmem:[%s5 + $0x10] sm:$0xff]
        %v633 = vld [vmem:[%s5 + $0x18] sm:$0xff]
        %vm634 = vcmask 261120
        %v636 = vsel %vm634, %v615, 0
        %638 = vmatprep.subr.mxu0 0.0
        %639 = vmatpush1.msra.mxu0 %v630
        %640 = vmatprep.subr.mxu0 0.0
        %641 = vmatpush1.msra.mxu0 %v631
        %642 = vmatprep.subr.mxu0 0.0
        %643 = vmatpush1.msra.mxu0 %v632
        %644 = vmatprep.subr.mxu0 0.0
        %645 = vmatpush1.msra.mxu0 %v633
        %646 = vmatprep.subr.mxu0 0.0
        %647 = vmatpush1.msra.mxu0 0.0
        %648 = vmatprep.subr.mxu0 0.0
        %649 = vmatpush1.msra.mxu0 0.0
        %650 = vmatprep.subr.mxu0 0.0
        %651 = vmatpush1.msra.mxu0 0.0
        %652 = vmatprep.subr.mxu0 0.0
        %653 = vmatpush1.msra.mxu0 0.0
        %654 = vmatprep.subr.mxu0 0.0
        %655 = vmatpush1.msra.mxu0 0.0
        %656 = vmatprep.subr.mxu0 0.0
        %657 = vmatpush1.msra.mxu0 0.0
        %658 = vmatprep.subr.mxu0 0.0
        %659 = vmatpush1.msra.mxu0 0.0
        %660 = vmatprep.subr.mxu0 0.0
        %661 = vmatpush1.msra.mxu0 0.0
        %662 = vmatprep.subr.mxu0 0.0
        %663 = vmatpush1.msra.mxu0 0.0
        %664 = vmatprep.subr.mxu0 0.0
        %665 = vmatpush1.msra.mxu0 0.0
        %666 = vmatprep.subr.mxu0 0.0
        %667 = vmatpush1.msra.mxu0 0.0
        %668 = vmatprep.subr.mxu0 0.0
        %669 = vmatpush1.msra.mxu0 0.0
        %670 = vmatprep.subr.mxu0 0.0
        %671 = vmatpush1.msra.mxu0 0.0
        %672 = vmatprep.subr.mxu0 0.0
        %673 = vmatpush1.msra.mxu0 0.0
        %674 = vmatprep.subr.mxu0 0.0
        %675 = vmatpush1.msra.mxu0 0.0
        %676 = vmatprep.subr.mxu0 0.0
        %677 = vmatpush1.msra.mxu0 0.0
        %678 = vmatprep.subr.mxu0 0.0
        %679 = vmatpush1.msra.mxu0 0.0
        %680 = vmatprep.subr.mxu0 0.0
        %681 = vmatpush1.msra.mxu0 0.0
        %682 = vmatprep.subr.mxu0 0.0
        %683 = vmatpush1.msra.mxu0 0.0
        %684 = vmatprep.subr.mxu0 0.0
        %685 = vmatpush1.msra.mxu0 0.0
        %686 = vmatprep.subr.mxu0 0.0
        %687 = vmatpush1.msra.mxu0 0.0
        %688 = vmatprep.subr.mxu0 0.0
        %689 = vmatpush1.msra.mxu0 0.0
        %690 = vmatprep.subr.mxu0 0.0
        %691 = vmatpush1.msra.mxu0 0.0
        %692 = vmatprep.subr.mxu0 0.0
        %693 = vmatpush1.msra.mxu0 0.0
        %694 = vmatprep.subr.mxu0 0.0
        %695 = vmatpush1.msra.mxu0 0.0
        %696 = vmatprep.subr.mxu0 0.0
        %697 = vmatpush1.msra.mxu0 0.0
        %698 = vmatprep.subr.mxu0 0.0
        %699 = vmatpush1.msra.mxu0 0.0
        %700 = vmatprep.subr.mxu0 0.0
        %701 = vmatpush1.msra.mxu0 0.0
        %702 = vmatprep.mubr.f32.mxu0 0.0
        %703 = vmatmul.mubr.f32.gmra.mrb[0].mxu0 %v636
        %v704 = vpop.f32.mrb[0].mxu0
        %v705 = vadd.f32 0.0, %v704
        %v706 = vpop.f32.mrb[0].mxu0
        %707 = vdwg.mxu0
        %v708 = vld [vmem:[%s6] sm:$0xff]
        %v709 = vld [vmem:[%s6 + $0x8] sm:$0xff]
        %v710 = vld [vmem:[%s6 + $0x10] sm:$0xff]
        %v711 = vld [vmem:[%s6 + $0x18] sm:$0xff]
        %v713 = vsel %vm634, %v616, 0
        %v716 = vsel %vm634, %v617, 0
        %718 = vmatprep.subr.mxu0 0.0
        %719 = vmatpush1.msra.mxu0 %v708
        %720 = vmatprep.subr.mxu0 0.0
        %721 = vmatpush1.msra.mxu0 %v709
        %722 = vmatprep.subr.mxu0 0.0
        %723 = vmatpush1.msra.mxu0 %v710
        %724 = vmatprep.subr.mxu0 0.0
        %725 = vmatpush1.msra.mxu0 %v711
        %726 = vmatprep.subr.mxu0 0.0
        %727 = vmatpush1.msra.mxu0 0.0
        %728 = vmatprep.subr.mxu0 0.0
        %729 = vmatpush1.msra.mxu0 0.0
        %730 = vmatprep.subr.mxu0 0.0
        %731 = vmatpush1.msra.mxu0 0.0
        %732 = vmatprep.subr.mxu0 0.0
        %733 = vmatpush1.msra.mxu0 0.0
        %734 = vmatprep.subr.mxu0 0.0
        %735 = vmatpush1.msra.mxu0 0.0
        %736 = vmatprep.subr.mxu0 0.0
        %737 = vmatpush1.msra.mxu0 0.0
        %738 = vmatprep.subr.mxu0 0.0
        %739 = vmatpush1.msra.mxu0 0.0
        %740 = vmatprep.subr.mxu0 0.0
        %741 = vmatpush1.msra.mxu0 0.0
        %742 = vmatprep.subr.mxu0 0.0
        %743 = vmatpush1.msra.mxu0 0.0
        %744 = vmatprep.subr.mxu0 0.0
        %745 = vmatpush1.msra.mxu0 0.0
        %746 = vmatprep.subr.mxu0 0.0
        %747 = vmatpush1.msra.mxu0 0.0
        %748 = vmatprep.subr.mxu0 0.0
        %749 = vmatpush1.msra.mxu0 0.0
        %750 = vmatprep.subr.mxu0 0.0
        %751 = vmatpush1.msra.mxu0 0.0
        %752 = vmatprep.subr.mxu0 0.0
        %753 = vmatpush1.msra.mxu0 0.0
        %754 = vmatprep.subr.mxu0 0.0
        %755 = vmatpush1.msra.mxu0 0.0
        %756 = vmatprep.subr.mxu0 0.0
        %757 = vmatpush1.msra.mxu0 0.0
        %758 = vmatprep.subr.mxu0 0.0
        %759 = vmatpush1.msra.mxu0 0.0
        %760 = vmatprep.subr.mxu0 0.0
        %761 = vmatpush1.msra.mxu0 0.0
        %762 = vmatprep.subr.mxu0 0.0
        %763 = vmatpush1.msra.mxu0 0.0
        %764 = vmatprep.subr.mxu0 0.0
        %765 = vmatpush1.msra.mxu0 0.0
        %766 = vmatprep.subr.mxu0 0.0
        %767 = vmatpush1.msra.mxu0 0.0
        %768 = vmatprep.subr.mxu0 0.0
        %769 = vmatpush1.msra.mxu0 0.0
        %770 = vmatprep.subr.mxu0 0.0
        %771 = vmatpush1.msra.mxu0 0.0
        %772 = vmatprep.subr.mxu0 0.0
        %773 = vmatpush1.msra.mxu0 0.0
        %774 = vmatprep.subr.mxu0 0.0
        %775 = vmatpush1.msra.mxu0 0.0
        %776 = vmatprep.subr.mxu0 0.0
        %777 = vmatpush1.msra.mxu0 0.0
        %778 = vmatprep.subr.mxu0 0.0
        %779 = vmatpush1.msra.mxu0 0.0
        %780 = vmatprep.subr.mxu0 0.0
        %781 = vmatpush1.msra.mxu0 0.0
        %782 = vmatprep.mubr.f32.mxu0 0.0
        %783 = vmatmul.mubr.f32.gmra.mrb[0].mxu0 %v713
        %v784 = vpop.f32.mrb[0].mxu0
        %v785 = vadd.f32 0.0, %v784
        %v786 = vpop.f32.mrb[0].mxu0
        %787 = vmatprep.mubr.f32.mxu0 0.0
        %788 = vmatmul.mubr.f32.gmra.mrb[0].mxu0 %v716
        %v789 = vpop.f32.mrb[0].mxu0
        %v790 = vadd.f32 0.0, %v789
        %v791 = vpop.f32.mrb[0].mxu0
        %792 = vdwg.mxu0
        %v793 = vld [vmem:[#allocation7] sm:$0x3]
        %795 = vset.pattern.permute.xlu0 0
        %796 = vperm.xlu0 %795, %v618
        %v797 = vpop.permute.xlu0 %796
        %v799 = vlaneseq
        %v800 = vshrl.u32 %v799, 7
        %v801 = vsub.s32 0, %v800
        %v802 = vrot.slane %v793, %v801
        %v803 = vmul.f32 %v797, %v802
        %804 = vset.pattern.permute.xlu0 1
        %805 = vperm.xlu0 %804, %v618
        %v806 = vpop.permute.xlu0 %805
        %v808 = vlaneseq
        %v809 = vshrl.u32 %v808, 7
        %v810 = vsub.s32 1, %v809
        %v811 = vrot.slane %v793, %v810
        %v812 = vmul.f32 %v806, %v811
        %v813 = vadd.f32 %v803, %v812
        %v814 = vlaneseq
        %v815 = vshrl.u32 %v814, 7
        %v816 = vsub.s32 0, %v815
        %v817 = vrot.slane %v623, %v816
        %v818 = vadd.f32 %v813, %v817
        %820 = vset.pattern.permute.xlu0 0
        %821 = vperm.xlu0 %820, %v619
        %v822 = vpop.permute.xlu0 %821
        %825 = vset.pattern.permute.xlu0 0
        %826 = vperm.xlu0 %825, %v620
        %v827 = vpop.permute.xlu0 %826
        %v829 = vmul.f32 %v822, %v802
        %v830 = vmul.f32 %v827, %v802
        %831 = vset.pattern.permute.xlu0 1
        %832 = vperm.xlu0 %831, %v619
        %v833 = vpop.permute.xlu0 %832
        %835 = vset.pattern.permute.xlu0 1
        %836 = vperm.xlu0 %835, %v620
        %v837 = vpop.permute.xlu0 %836
        %v839 = vmul.f32 %v833, %v811
        %v840 = vmul.f32 %v837, %v811
        %v841 = vadd.f32 %v829, %v839
        %v842 = vadd.f32 %v830, %v840
        %843 = vxpose.xlu0.b32.start [1/16] %v841, 128
        %844 = vxpose.xlu0.b32.cont [2/16] %v842, 128
        %845 = vxpose.xlu0.b32.cont [3/16] 0.0, 128
        %846 = vxpose.xlu0.b32.cont [4/16] 0.0, 128
        %847 = vxpose.xlu0.b32.cont [5/16] 0.0, 128
        %848 = vxpose.xlu0.b32.cont [6/16] 0.0, 128
        %849 = vxpose.xlu0.b32.cont [7/16] 0.0, 128
        %850 = vxpose.xlu0.b32.cont [8/16] 0.0, 128
        %851 = vxpose.xlu0.b32.cont [9/16] 0.0, 128
        %852 = vxpose.xlu0.b32.cont [10/16] 0.0, 128
        %853 = vxpose.xlu0.b32.cont [11/16] 0.0, 128
        %854 = vxpose.xlu0.b32.cont [12/16] 0.0, 128
        %855 = vxpose.xlu0.b32.cont [13/16] 0.0, 128
        %856 = vxpose.xlu0.b32.cont [14/16] 0.0, 128
        %857 = vxpose.xlu0.b32.cont [15/16] 0.0, 128
        %858 = vxpose.xlu0.b32.end [16/16] 0.0, 128
        %v859 = vpop.trf.xlu0
        %v860 = vpop.trf.xlu0
        %v861 = vpop.trf.xlu0
        %v862 = vpop.trf.xlu0
        %v863 = vpop.trf.xlu0
        %v864 = vpop.trf.xlu0
        %v865 = vpop.trf.xlu0
        %v866 = vpop.trf.xlu0
        %v867 = vpop.trf.xlu0
        %v868 = vpop.trf.xlu0
        %v869 = vpop.trf.xlu0
        %v870 = vpop.trf.xlu0
        %v871 = vpop.trf.xlu0
        %v872 = vpop.trf.xlu0
        %v873 = vpop.trf.xlu0
        %v874 = vpop.trf.xlu0
        %v875 = vld [vmem:[%s9] sm:$0xff]
        %v876 = vld [vmem:[%s9 + $0x8] sm:$0xff]
        %v877 = vld [vmem:[#allocation8 + $0x2] sm:$0x1]
        %s879 = vtos %v877
        %v880 = vstv %s879
        %v882 = vadd.f32 %v621, %v880
        %883 = vrot.lane.b32.xlu0 %v877, 127
        %v884 = vpop.permute.xlu0 %883
        %s885 = vtos %v884
        %v886 = vstv %s885
        %v888 = vadd.f32 %v621, %v886
        %890 = vset.pattern.permute.xlu0 0
        %891 = vperm.xlu0 %890, %v818
        %v892 = vpop.permute.xlu0 %891
        %v894 = vlaneseq
        %v895 = vshrl.u32 %v894, 7
        %v896 = vsub.s32 0, %v895
        %v897 = vrot.slane %v859, %v896
        %v898 = vsub.f32 %v892, %v897
        %v899 = vmax.f32 %v898, 0.0
        %s901 = vtos %v875
        %v902 = vstv %s901
        %v904 = vmul.f32 %v899, %v902
        %v905 = vadd.f32 %v882, %v904
        %906 = vrot.lane.b32.xlu0 %v875, 127
        %v907 = vpop.permute.xlu0 %906
        %s908 = vtos %v907
        %v909 = vstv %s908
        %v911 = vmul.f32 %v899, %v909
        %v912 = vadd.f32 %v888, %v911
        %913 = vset.pattern.permute.xlu0 1
        %914 = vperm.xlu0 %913, %v818
        %v915 = vpop.permute.xlu0 %914
        %v917 = vlaneseq
        %v918 = vshrl.u32 %v917, 7
        %v919 = vsub.s32 1, %v918
        %v920 = vrot.slane %v859, %v919
        %v921 = vsub.f32 %v915, %v920
        %v922 = vmax.f32 %v921, 0.0
        %v923 = vrot.slane %v875, 1
        %s924 = vtos %v923
        %v925 = vstv %s924
        %v927 = vmul.f32 %v922, %v925
        %v928 = vadd.f32 %v905, %v927
        %929 = vrot.lane.b32.xlu0 %v923, 127
        %v930 = vpop.permute.xlu0 %929
        %s931 = vtos %v930
        %v932 = vstv %s931
        %v934 = vmul.f32 %v922, %v932
        %v935 = vadd.f32 %v912, %v934
        %936 = vset.pattern.permute.xlu0 2
        %937 = vperm.xlu0 %936, %v818
        %v938 = vpop.permute.xlu0 %937
        %v940 = vlaneseq
        %v941 = vshrl.u32 %v940, 7
        %v942 = vsub.s32 2, %v941
        %v943 = vrot.slane %v859, %v942
        %v944 = vsub.f32 %v938, %v943
        %v945 = vmax.f32 %v944, 0.0
        %v946 = vrot.slane %v875, 2
        %s947 = vtos %v946
        %v948 = vstv %s947
        %v950 = vmul.f32 %v945, %v948
        %v951 = vadd.f32 %v928, %v950
        %952 = vrot.lane.b32.xlu0 %v946, 127
        %v953 = vpop.permute.xlu0 %952
        %s954 = vtos %v953
        %v955 = vstv %s954
        %v957 = vmul.f32 %v945, %v955
        %v958 = vadd.f32 %v935, %v957
        %959 = vset.pattern.permute.xlu0 3
        %960 = vperm.xlu0 %959, %v818
        %v961 = vpop.permute.xlu0 %960
        %v963 = vlaneseq
        %v964 = vshrl.u32 %v963, 7
        %v965 = vsub.s32 3, %v964
        %v966 = vrot.slane %v859, %v965
        %v967 = vsub.f32 %v961, %v966
        %v968 = vmax.f32 %v967, 0.0
        %v969 = vrot.slane %v875, 3
        %s970 = vtos %v969
        %v971 = vstv %s970
        %v973 = vmul.f32 %v968, %v971
        %v974 = vadd.f32 %v951, %v973
        %975 = vrot.lane.b32.xlu0 %v969, 127
        %v976 = vpop.permute.xlu0 %975
        %s977 = vtos %v976
        %v978 = vstv %s977
        %v980 = vmul.f32 %v968, %v978
        %v981 = vadd.f32 %v958, %v980
        %982 = vset.pattern.permute.xlu0 4
        %983 = vperm.xlu0 %982, %v818
        %v984 = vpop.permute.xlu0 %983
        %v986 = vlaneseq
        %v987 = vshrl.u32 %v986, 7
        %v988 = vsub.s32 4, %v987
        %v989 = vrot.slane %v859, %v988
        %v990 = vsub.f32 %v984, %v989
        %v991 = vmax.f32 %v990, 0.0
        %v992 = vrot.slane %v875, 4
        %s993 = vtos %v992
        %v994 = vstv %s993
        %v996 = vmul.f32 %v991, %v994
        %v997 = vadd.f32 %v974, %v996
        %998 = vrot.lane.b32.xlu0 %v992, 127
        %v999 = vpop.permute.xlu0 %998
        %s1000 = vtos %v999
        %v1001 = vstv %s1000
        %v1003 = vmul.f32 %v991, %v1001
        %v1004 = vadd.f32 %v981, %v1003
        %1005 = vset.pattern.permute.xlu0 5
        %1006 = vperm.xlu0 %1005, %v818
        %v1007 = vpop.permute.xlu0 %1006
        %v1009 = vlaneseq
        %v1010 = vshrl.u32 %v1009, 7
        %v1011 = vsub.s32 5, %v1010
        %v1012 = vrot.slane %v859, %v1011
        %v1013 = vsub.f32 %v1007, %v1012
        %v1014 = vmax.f32 %v1013, 0.0
        %v1015 = vrot.slane %v875, 5
        %s1016 = vtos %v1015
        %v1017 = vstv %s1016
        %v1019 = vmul.f32 %v1014, %v1017
        %v1020 = vadd.f32 %v997, %v1019
        %1021 = vrot.lane.b32.xlu0 %v1015, 127
        %v1022 = vpop.permute.xlu0 %1021
        %s1023 = vtos %v1022
        %v1024 = vstv %s1023
        %v1026 = vmul.f32 %v1014, %v1024
        %v1027 = vadd.f32 %v1004, %v1026
        %1028 = vset.pattern.permute.xlu0 6
        %1029 = vperm.xlu0 %1028, %v818
        %v1030 = vpop.permute.xlu0 %1029
        %v1032 = vlaneseq
        %v1033 = vshrl.u32 %v1032, 7
        %v1034 = vsub.s32 6, %v1033
        %v1035 = vrot.slane %v859, %v1034
        %v1036 = vsub.f32 %v1030, %v1035
        %v1037 = vmax.f32 %v1036, 0.0
        %v1038 = vrot.slane %v875, 6
        %s1039 = vtos %v1038
        %v1040 = vstv %s1039
        %v1042 = vmul.f32 %v1037, %v1040
        %v1043 = vadd.f32 %v1020, %v1042
        %1044 = vrot.lane.b32.xlu0 %v1038, 127
        %v1045 = vpop.permute.xlu0 %1044
        %s1046 = vtos %v1045
        %v1047 = vstv %s1046
        %v1049 = vmul.f32 %v1037, %v1047
        %v1050 = vadd.f32 %v1027, %v1049
        %1051 = vset.pattern.permute.xlu0 7
        %1052 = vperm.xlu0 %1051, %v818
        %v1053 = vpop.permute.xlu0 %1052
        %v1055 = vlaneseq
        %v1056 = vshrl.u32 %v1055, 7
        %v1057 = vsub.s32 7, %v1056
        %v1058 = vrot.slane %v859, %v1057
        %v1059 = vsub.f32 %v1053, %v1058
        %v1060 = vmax.f32 %v1059, 0.0
        %v1061 = vrot.slane %v875, 7
        %s1062 = vtos %v1061
        %v1063 = vstv %s1062
        %v1065 = vmul.f32 %v1060, %v1063
        %v1066 = vadd.f32 %v1043, %v1065
        %1067 = vrot.lane.b32.xlu0 %v1061, 127
        %v1068 = vpop.permute.xlu0 %1067
        %s1069 = vtos %v1068
        %v1070 = vstv %s1069
        %v1072 = vmul.f32 %v1060, %v1070
        %v1073 = vadd.f32 %v1050, %v1072
        %1074 = vset.pattern.permute.xlu0 8
        %1075 = vperm.xlu0 %1074, %v818
        %v1076 = vpop.permute.xlu0 %1075
        %v1078 = vlaneseq
        %v1079 = vshrl.u32 %v1078, 7
        %v1080 = vsub.s32 0, %v1079
        %v1081 = vrot.slane %v860, %v1080
        %v1082 = vsub.f32 %v1076, %v1081
        %v1083 = vmax.f32 %v1082, 0.0
        %s1085 = vtos %v876
        %v1086 = vstv %s1085
        %v1088 = vmul.f32 %v1083, %v1086
        %v1089 = vadd.f32 %v1066, %v1088
        %1090 = vrot.lane.b32.xlu0 %v876, 127
        %v1091 = vpop.permute.xlu0 %1090
        %s1092 = vtos %v1091
        %v1093 = vstv %s1092
        %v1095 = vmul.f32 %v1083, %v1093
        %v1096 = vadd.f32 %v1073, %v1095
        %1097 = vset.pattern.permute.xlu0 9
        %1098 = vperm.xlu0 %1097, %v818
        %v1099 = vpop.permute.xlu0 %1098
        %v1101 = vlaneseq
        %v1102 = vshrl.u32 %v1101, 7
        %v1103 = vsub.s32 1, %v1102
        %v1104 = vrot.slane %v860, %v1103
        %v1105 = vsub.f32 %v1099, %v1104
        %v1106 = vmax.f32 %v1105, 0.0
        %v1107 = vrot.slane %v876, 1
        %s1108 = vtos %v1107
        %v1109 = vstv %s1108
        %v1111 = vmul.f32 %v1106, %v1109
        %v1112 = vadd.f32 %v1089, %v1111
        %1113 = vrot.lane.b32.xlu0 %v1107, 127
        %v1114 = vpop.permute.xlu0 %1113
        %s1115 = vtos %v1114
        %v1116 = vstv %s1115
        %v1118 = vmul.f32 %v1106, %v1116
        %v1119 = vadd.f32 %v1096, %v1118
        %1120 = vset.pattern.permute.xlu0 10
        %1121 = vperm.xlu0 %1120, %v818
        %v1122 = vpop.permute.xlu0 %1121
        %v1124 = vlaneseq
        %v1125 = vshrl.u32 %v1124, 7
        %v1126 = vsub.s32 2, %v1125
        %v1127 = vrot.slane %v860, %v1126
        %v1128 = vsub.f32 %v1122, %v1127
        %v1129 = vmax.f32 %v1128, 0.0
        %v1130 = vrot.slane %v876, 2
        %s1131 = vtos %v1130
        %v1132 = vstv %s1131
        %v1134 = vmul.f32 %v1129, %v1132
        %v1135 = vadd.f32 %v1112, %v1134
        %1136 = vrot.lane.b32.xlu0 %v1130, 127
        %v1137 = vpop.permute.xlu0 %1136
        %s1138 = vtos %v1137
        %v1139 = vstv %s1138
        %v1141 = vmul.f32 %v1129, %v1139
        %v1142 = vadd.f32 %v1119, %v1141
        %1143 = vset.pattern.permute.xlu0 11
        %1144 = vperm.xlu0 %1143, %v818
        %v1145 = vpop.permute.xlu0 %1144
        %v1147 = vlaneseq
        %v1148 = vshrl.u32 %v1147, 7
        %v1149 = vsub.s32 3, %v1148
        %v1150 = vrot.slane %v860, %v1149
        %v1151 = vsub.f32 %v1145, %v1150
        %v1152 = vmax.f32 %v1151, 0.0
        %v1153 = vrot.slane %v876, 3
        %s1154 = vtos %v1153
        %v1155 = vstv %s1154
        %v1157 = vmul.f32 %v1152, %v1155
        %v1158 = vadd.f32 %v1135, %v1157
        %1159 = vrot.lane.b32.xlu0 %v1153, 127
        %v1160 = vpop.permute.xlu0 %1159
        %s1161 = vtos %v1160
        %v1162 = vstv %s1161
        %v1164 = vmul.f32 %v1152, %v1162
        %v1165 = vadd.f32 %v1142, %v1164
        %1166 = vset.pattern.permute.xlu0 12
        %1167 = vperm.xlu0 %1166, %v818
        %v1168 = vpop.permute.xlu0 %1167
        %v1170 = vlaneseq
        %v1171 = vshrl.u32 %v1170, 7
        %v1172 = vsub.s32 4, %v1171
        %v1173 = vrot.slane %v860, %v1172
        %v1174 = vsub.f32 %v1168, %v1173
        %v1175 = vmax.f32 %v1174, 0.0
        %v1176 = vrot.slane %v876, 4
        %s1177 = vtos %v1176
        %v1178 = vstv %s1177
        %v1180 = vmul.f32 %v1175, %v1178
        %v1181 = vadd.f32 %v1158, %v1180
        %1182 = vrot.lane.b32.xlu0 %v1176, 127
        %v1183 = vpop.permute.xlu0 %1182
        %s1184 = vtos %v1183
        %v1185 = vstv %s1184
        %v1187 = vmul.f32 %v1175, %v1185
        %v1188 = vadd.f32 %v1165, %v1187
        %1189 = vset.pattern.permute.xlu0 13
        %1190 = vperm.xlu0 %1189, %v818
        %v1191 = vpop.permute.xlu0 %1190
        %v1193 = vlaneseq
        %v1194 = vshrl.u32 %v1193, 7
        %v1195 = vsub.s32 5, %v1194
        %v1196 = vrot.slane %v860, %v1195
        %v1197 = vsub.f32 %v1191, %v1196
        %v1198 = vmax.f32 %v1197, 0.0
        %v1199 = vrot.slane %v876, 5
        %s1200 = vtos %v1199
        %v1201 = vstv %s1200
        %v1203 = vmul.f32 %v1198, %v1201
        %v1204 = vadd.f32 %v1181, %v1203
        %1205 = vrot.lane.b32.xlu0 %v1199, 127
        %v1206 = vpop.permute.xlu0 %1205
        %s1207 = vtos %v1206
        %v1208 = vstv %s1207
        %v1210 = vmul.f32 %v1198, %v1208
        %v1211 = vadd.f32 %v1188, %v1210
        %1212 = vset.pattern.permute.xlu0 14
        %1213 = vperm.xlu0 %1212, %v818
        %v1214 = vpop.permute.xlu0 %1213
        %v1216 = vlaneseq
        %v1217 = vshrl.u32 %v1216, 7
        %v1218 = vsub.s32 6, %v1217
        %v1219 = vrot.slane %v860, %v1218
        %v1220 = vsub.f32 %v1214, %v1219
        %v1221 = vmax.f32 %v1220, 0.0
        %v1222 = vrot.slane %v876, 6
        %s1223 = vtos %v1222
        %v1224 = vstv %s1223
        %v1226 = vmul.f32 %v1221, %v1224
        %v1227 = vadd.f32 %v1204, %v1226
        %1228 = vrot.lane.b32.xlu0 %v1222, 127
        %v1229 = vpop.permute.xlu0 %1228
        %s1230 = vtos %v1229
        %v1231 = vstv %s1230
        %v1233 = vmul.f32 %v1221, %v1231
        %v1234 = vadd.f32 %v1211, %v1233
        %1235 = vset.pattern.permute.xlu0 15
        %1236 = vperm.xlu0 %1235, %v818
        %v1237 = vpop.permute.xlu0 %1236
        %v1239 = vlaneseq
        %v1240 = vshrl.u32 %v1239, 7
        %v1241 = vsub.s32 7, %v1240
        %v1242 = vrot.slane %v860, %v1241
        %v1243 = vsub.f32 %v1237, %v1242
        %v1244 = vmax.f32 %v1243, 0.0
        %v1245 = vrot.slane %v876, 7
        %s1246 = vtos %v1245
        %v1247 = vstv %s1246
        %v1249 = vmul.f32 %v1244, %v1247
        %v1250 = vadd.f32 %v1227, %v1249
        %1251 = vrot.lane.b32.xlu0 %v1245, 127
        %v1252 = vpop.permute.xlu0 %1251
        %s1253 = vtos %v1252
        %v1254 = vstv %s1253
        %v1256 = vmul.f32 %v1244, %v1254
        %v1257 = vadd.f32 %v1234, %v1256
        %vm1258 = vcmask 130048
        %v1260 = vsel %vm1258, %v705, 0
        %v1263 = vsel %vm1258, %v785, 0
        %v1266 = vsel %vm1258, %v790, 0
        %1268 = vmatprep.subr.mxu0 0.0
        %1269 = vmatpush1.xpose.msra.mxu0 %v1263
        %1270 = vmatprep.subr.mxu0 0.0
        %1271 = vmatpush1.xpose.msra.mxu0 %v1266
        %1272 = vmatprep.subr.mxu0 0.0
        %1273 = vmatpush1.xpose.msra.mxu0 0.0
        %1274 = vmatprep.subr.mxu0 0.0
        %1275 = vmatpush1.xpose.msra.mxu0 0.0
        %1276 = vmatprep.subr.mxu0 0.0
        %1277 = vmatpush1.xpose.msra.mxu0 0.0
        %1278 = vmatprep.subr.mxu0 0.0
        %1279 = vmatpush1.xpose.msra.mxu0 0.0
        %1280 = vmatprep.subr.mxu0 0.0
        %1281 = vmatpush1.xpose.msra.mxu0 0.0
        %1282 = vmatprep.subr.mxu0 0.0
        %1283 = vmatpush1.xpose.msra.mxu0 0.0
        %1284 = vmatprep.subr.mxu0 0.0
        %1285 = vmatpush1.xpose.msra.mxu0 0.0
        %1286 = vmatprep.subr.mxu0 0.0
        %1287 = vmatpush1.xpose.msra.mxu0 0.0
        %1288 = vmatprep.subr.mxu0 0.0
        %1289 = vmatpush1.xpose.msra.mxu0 0.0
        %1290 = vmatprep.subr.mxu0 0.0
        %1291 = vmatpush1.xpose.msra.mxu0 0.0
        %1292 = vmatprep.subr.mxu0 0.0
        %1293 = vmatpush1.xpose.msra.mxu0 0.0
        %1294 = vmatprep.subr.mxu0 0.0
        %1295 = vmatpush1.xpose.msra.mxu0 0.0
        %1296 = vmatprep.subr.mxu0 0.0
        %1297 = vmatpush1.xpose.msra.mxu0 0.0
        %1298 = vmatprep.subr.mxu0 0.0
        %1299 = vmatpush1.xpose.msra.mxu0 0.0
        %1300 = vmatprep.subr.mxu0 0.0
        %1301 = vmatpush1.xpose.msra.mxu0 0.0
        %1302 = vmatprep.subr.mxu0 0.0
        %1303 = vmatpush1.xpose.msra.mxu0 0.0
        %1304 = vmatprep.subr.mxu0 0.0
        %1305 = vmatpush1.xpose.msra.mxu0 0.0
        %1306 = vmatprep.subr.mxu0 0.0
        %1307 = vmatpush1.xpose.msra.mxu0 0.0
        %1308 = vmatprep.subr.mxu0 0.0
        %1309 = vmatpush1.xpose.msra.mxu0 0.0
        %1310 = vmatprep.subr.mxu0 0.0
        %1311 = vmatpush1.xpose.msra.mxu0 0.0
        %1312 = vmatprep.subr.mxu0 0.0
        %1313 = vmatpush1.xpose.msra.mxu0 0.0
        %1314 = vmatprep.subr.mxu0 0.0
        %1315 = vmatpush1.xpose.msra.mxu0 0.0
        %1316 = vmatprep.subr.mxu0 0.0
        %1317 = vmatpush1.xpose.msra.mxu0 0.0
        %1318 = vmatprep.subr.mxu0 0.0
        %1319 = vmatpush1.xpose.msra.mxu0 0.0
        %1320 = vmatprep.subr.mxu0 0.0
        %1321 = vmatpush1.xpose.msra.mxu0 0.0
        %1322 = vmatprep.subr.mxu0 0.0
        %1323 = vmatpush1.xpose.msra.mxu0 0.0
        %1324 = vmatprep.subr.mxu0 0.0
        %1325 = vmatpush1.xpose.msra.mxu0 0.0
        %1326 = vmatprep.subr.mxu0 0.0
        %1327 = vmatpush1.xpose.msra.mxu0 0.0
        %1328 = vmatprep.subr.mxu0 0.0
        %1329 = vmatpush1.xpose.msra.mxu0 0.0
        %1330 = vmatprep.subr.mxu0 0.0
        %1331 = vmatpush1.xpose.msra.mxu0 0.0
        %1332 = vmatprep.mubr.f32.mxu0 0.0
        %1333 = vmatmul.mubr.f32.gmra.mrb[0].mxu0 %v1260
        %v1334 = vpop.f32.mrb[0].mxu0
        %v1335 = vadd.f32 %v1250, %v1334
        %v1336 = vpop.f32.mrb[0].mxu0
        %1337 = vdwg.mxu0
        %vm1338 = vcmask 97280
        %v1339 = vsel %vm1338, %v1335, -inf
        %1340 = vmax.xlane.f32.xlu0 %v1339
        %v1341 = vpop.xlane.xlu0 %1340
        %v1342 = vsub.f32 %v1335, %v1341
        %v1343 = vmul.f32 %v1342, 1.442695
        %v1344 = vpow.pop %v1343
        %v1345 = vsel %vm1338, %v1344, 0.0
        %1346 = vadd.xlane.f32.xlu0 %v1345
        %v1347 = vpop.xlane.xlu0 %1346
        %v1348 = vrcp.pop %v1347
        %v1349 = vmul.f32 1.0, %v1348
        %v1350 = vmul.f32 %v1344, %v1349
        %v1351 = vadd.f32 %v1350, 0.0
        %1352 = vrot.lane.b32.xlu0 %v785, 96
        %v1353 = vpop.permute.xlu0 %1352
        %1354 = vrot.lane.b32.xlu0 %v790, 96
        %v1355 = vpop.permute.xlu0 %1354
        %v1358 = vsel %vm1338, %v1350, 0
        %vm1360 = vcmask 1043456
        %v1361 = vsel %vm1360, %v1355, 0
        %1363 = vmatprep.subr.mxu0 0.0
        %1364 = vmatpush1.msra.mxu0 %v1353
        %1365 = vmatprep.subr.mxu0 0.0
        %1366 = vmatpush1.msra.mxu0 %v1361
        %1367 = vmatprep.subr.mxu0 0.0
        %1368 = vmatpush1.msra.mxu0 0.0
        %1369 = vmatprep.subr.mxu0 0.0
        %1370 = vmatpush1.msra.mxu0 0.0
        %1371 = vmatprep.subr.mxu0 0.0
        %1372 = vmatpush1.msra.mxu0 0.0
        %1373 = vmatprep.subr.mxu0 0.0
        %1374 = vmatpush1.msra.mxu0 0.0
        %1375 = vmatprep.subr.mxu0 0.0
        %1376 = vmatpush1.msra.mxu0 0.0
        %1377 = vmatprep.subr.mxu0 0.0
        %1378 = vmatpush1.msra.mxu0 0.0
        %1379 = vmatprep.subr.mxu0 0.0
        %1380 = vmatpush1.msra.mxu0 0.0
        %1381 = vmatprep.subr.mxu0 0.0
        %1382 = vmatpush1.msra.mxu0 0.0
        %1383 = vmatprep.subr.mxu0 0.0
        %1384 = vmatpush1.msra.mxu0 0.0
        %1385 = vmatprep.subr.mxu0 0.0
        %1386 = vmatpush1.msra.mxu0 0.0
        %1387 = vmatprep.subr.mxu0 0.0
        %1388 = vmatpush1.msra.mxu0 0.0
        %1389 = vmatprep.subr.mxu0 0.0
        %1390 = vmatpush1.msra.mxu0 0.0
        %1391 = vmatprep.subr.mxu0 0.0
        %1392 = vmatpush1.msra.mxu0 0.0
        %1393 = vmatprep.subr.mxu0 0.0
        %1394 = vmatpush1.msra.mxu0 0.0
        %1395 = vmatprep.subr.mxu0 0.0
        %1396 = vmatpush1.msra.mxu0 0.0
        %1397 = vmatprep.subr.mxu0 0.0
        %1398 = vmatpush1.msra.mxu0 0.0
        %1399 = vmatprep.subr.mxu0 0.0
        %1400 = vmatpush1.msra.mxu0 0.0
        %1401 = vmatprep.subr.mxu0 0.0
        %1402 = vmatpush1.msra.mxu0 0.0
        %1403 = vmatprep.subr.mxu0 0.0
        %1404 = vmatpush1.msra.mxu0 0.0
        %1405 = vmatprep.subr.mxu0 0.0
        %1406 = vmatpush1.msra.mxu0 0.0
        %1407 = vmatprep.subr.mxu0 0.0
        %1408 = vmatpush1.msra.mxu0 0.0
        %1409 = vmatprep.subr.mxu0 0.0
        %1410 = vmatpush1.msra.mxu0 0.0
        %1411 = vmatprep.subr.mxu0 0.0
        %1412 = vmatpush1.msra.mxu0 0.0
        %1413 = vmatprep.subr.mxu0 0.0
        %1414 = vmatpush1.msra.mxu0 0.0
        %1415 = vmatprep.subr.mxu0 0.0
        %1416 = vmatpush1.msra.mxu0 0.0
        %1417 = vmatprep.subr.mxu0 0.0
        %1418 = vmatpush1.msra.mxu0 0.0
        %1419 = vmatprep.subr.mxu0 0.0
        %1420 = vmatpush1.msra.mxu0 0.0
        %1421 = vmatprep.subr.mxu0 0.0
        %1422 = vmatpush1.msra.mxu0 0.0
        %1423 = vmatprep.subr.mxu0 0.0
        %1424 = vmatpush1.msra.mxu0 0.0
        %1425 = vmatprep.subr.mxu0 0.0
        %1426 = vmatpush1.msra.mxu0 0.0
        %1427 = vmatprep.mubr.f32.mxu0 0.0
        %1428 = vmatmul.mubr.f32.gmra.mrb[0].mxu0 %v1358
        %v1429 = vpop.f32.mrb[0].mxu0
        %v1430 = vadd.f32 0.0, %v1429
        %v1431 = vpop.f32.mrb[0].mxu0
        %1432 = vdwg.mxu0
        %v1433 = vld [vmem:[%s7] sm:$0xff]
        %v1434 = vld [vmem:[%s7 + $0x8] sm:$0xff]
        %1435 = vrot.lane.b32.xlu0 %v705, 112
        %v1436 = vpop.permute.xlu0 %1435
        %1437 = vrot.lane.b32.xlu0 %v785, 112
        %v1438 = vpop.permute.xlu0 %1437
        %1439 = vrot.lane.b32.xlu0 %v790, 112
        %v1440 = vpop.permute.xlu0 %1439
        %v1441 = vsel %vm1258, %v1436, 0
        %v1443 = vsel %vm1258, %v1438, 0
        %v1445 = vsel %vm1258, %v1440, 0
        %1447 = vmatprep.subr.mxu0 0.0
        %1448 = vmatpush1.xpose.msra.mxu0 %v1443
        %1449 = vmatprep.subr.mxu0 0.0
        %1450 = vmatpush1.xpose.msra.mxu0 %v1445
        %1451 = vmatprep.subr.mxu0 0.0
        %1452 = vmatpush1.xpose.msra.mxu0 0.0
        %1453 = vmatprep.subr.mxu0 0.0
        %1454 = vmatpush1.xpose.msra.mxu0 0.0
        %1455 = vmatprep.subr.mxu0 0.0
        %1456 = vmatpush1.xpose.msra.mxu0 0.0
        %1457 = vmatprep.subr.mxu0 0.0
        %1458 = vmatpush1.xpose.msra.mxu0 0.0
        %1459 = vmatprep.subr.mxu0 0.0
        %1460 = vmatpush1.xpose.msra.mxu0 0.0
        %1461 = vmatprep.subr.mxu0 0.0
        %1462 = vmatpush1.xpose.msra.mxu0 0.0
        %1463 = vmatprep.subr.mxu0 0.0
        %1464 = vmatpush1.xpose.msra.mxu0 0.0
        %1465 = vmatprep.subr.mxu0 0.0
        %1466 = vmatpush1.xpose.msra.mxu0 0.0
        %1467 = vmatprep.subr.mxu0 0.0
        %1468 = vmatpush1.xpose.msra.mxu0 0.0
        %1469 = vmatprep.subr.mxu0 0.0
        %1470 = vmatpush1.xpose.msra.mxu0 0.0
        %1471 = vmatprep.subr.mxu0 0.0
        %1472 = vmatpush1.xpose.msra.mxu0 0.0
        %1473 = vmatprep.subr.mxu0 0.0
        %1474 = vmatpush1.xpose.msra.mxu0 0.0
        %1475 = vmatprep.subr.mxu0 0.0
        %1476 = vmatpush1.xpose.msra.mxu0 0.0
        %1477 = vmatprep.subr.mxu0 0.0
        %1478 = vmatpush1.xpose.msra.mxu0 0.0
        %1479 = vmatprep.subr.mxu0 0.0
        %1480 = vmatpush1.xpose.msra.mxu0 0.0
        %1481 = vmatprep.subr.mxu0 0.0
        %1482 = vmatpush1.xpose.msra.mxu0 0.0
        %1483 = vmatprep.subr.mxu0 0.0
        %1484 = vmatpush1.xpose.msra.mxu0 0.0
        %1485 = vmatprep.subr.mxu0 0.0
        %1486 = vmatpush1.xpose.msra.mxu0 0.0
        %1487 = vmatprep.subr.mxu0 0.0
        %1488 = vmatpush1.xpose.msra.mxu0 0.0
        %1489 = vmatprep.subr.mxu0 0.0
        %1490 = vmatpush1.xpose.msra.mxu0 0.0
        %1491 = vmatprep.subr.mxu0 0.0
        %1492 = vmatpush1.xpose.msra.mxu0 0.0
        %1493 = vmatprep.subr.mxu0 0.0
        %1494 = vmatpush1.xpose.msra.mxu0 0.0
        %1495 = vmatprep.subr.mxu0 0.0
        %1496 = vmatpush1.xpose.msra.mxu0 0.0
        %1497 = vmatprep.subr.mxu0 0.0
        %1498 = vmatpush1.xpose.msra.mxu0 0.0
        %1499 = vmatprep.subr.mxu0 0.0
        %1500 = vmatpush1.xpose.msra.mxu0 0.0
        %1501 = vmatprep.subr.mxu0 0.0
        %1502 = vmatpush1.xpose.msra.mxu0 0.0
        %1503 = vmatprep.subr.mxu0 0.0
        %1504 = vmatpush1.xpose.msra.mxu0 0.0
        %1505 = vmatprep.subr.mxu0 0.0
        %1506 = vmatpush1.xpose.msra.mxu0 0.0
        %1507 = vmatprep.subr.mxu0 0.0
        %1508 = vmatpush1.xpose.msra.mxu0 0.0
        %1509 = vmatprep.subr.mxu0 0.0
        %1510 = vmatpush1.xpose.msra.mxu0 0.0
        %1511 = vmatprep.mubr.f32.mxu0 0.0
        %1512 = vmatmul.mubr.f32.gmra.mrb[0].mxu0 %v1441
        %v1513 = vpop.f32.mrb[0].mxu0
        %v1514 = vadd.f32 %v1257, %v1513
        %v1515 = vpop.f32.mrb[0].mxu0
        %1516 = vdwg.mxu0
        %v1517 = vsel %vm1338, %v1514, -inf
        %1518 = vmax.xlane.f32.xlu0 %v1517
        %v1519 = vpop.xlane.xlu0 %1518
        %v1520 = vsub.f32 %v1514, %v1519
        %v1521 = vmul.f32 %v1520, 1.442695
        %v1522 = vpow.pop %v1521
        %v1523 = vsel %vm1338, %v1522, 0.0
        %1524 = vadd.xlane.f32.xlu0 %v1523
        %v1525 = vpop.xlane.xlu0 %1524
        %v1526 = vrcp.pop %v1525
        %v1527 = vmul.f32 1.0, %v1526
        %v1528 = vmul.f32 %v1522, %v1527
        %v1529 = vadd.f32 %v1351, %v1528
        %1530 = vrot.lane.b32.xlu0 %v785, 80
        %v1531 = vpop.permute.xlu0 %1530
        %1532 = vrot.lane.b32.xlu0 %v790, 80
        %v1533 = vpop.permute.xlu0 %1532
        %v1536 = vsel %vm1338, %v1528, 0
        %v1538 = vsel %vm1360, %v1533, 0
        %1540 = vmatprep.subr.mxu0 0.0
        %1541 = vmatpush1.msra.mxu0 %v1531
        %1542 = vmatprep.subr.mxu0 0.0
        %1543 = vmatpush1.msra.mxu0 %v1538
        %1544 = vmatprep.subr.mxu0 0.0
        %1545 = vmatpush1.msra.mxu0 0.0
        %1546 = vmatprep.subr.mxu0 0.0
        %1547 = vmatpush1.msra.mxu0 0.0
        %1548 = vmatprep.subr.mxu0 0.0
        %1549 = vmatpush1.msra.mxu0 0.0
        %1550 = vmatprep.subr.mxu0 0.0
        %1551 = vmatpush1.msra.mxu0 0.0
        %1552 = vmatprep.subr.mxu0 0.0
        %1553 = vmatpush1.msra.mxu0 0.0
        %1554 = vmatprep.subr.mxu0 0.0
        %1555 = vmatpush1.msra.mxu0 0.0
        %1556 = vmatprep.subr.mxu0 0.0
        %1557 = vmatpush1.msra.mxu0 0.0
        %1558 = vmatprep.subr.mxu0 0.0
        %1559 = vmatpush1.msra.mxu0 0.0
        %1560 = vmatprep.subr.mxu0 0.0
        %1561 = vmatpush1.msra.mxu0 0.0
        %1562 = vmatprep.subr.mxu0 0.0
        %1563 = vmatpush1.msra.mxu0 0.0
        %1564 = vmatprep.subr.mxu0 0.0
        %1565 = vmatpush1.msra.mxu0 0.0
        %1566 = vmatprep.subr.mxu0 0.0
        %1567 = vmatpush1.msra.mxu0 0.0
        %1568 = vmatprep.subr.mxu0 0.0
        %1569 = vmatpush1.msra.mxu0 0.0
        %1570 = vmatprep.subr.mxu0 0.0
        %1571 = vmatpush1.msra.mxu0 0.0
        %1572 = vmatprep.subr.mxu0 0.0
        %1573 = vmatpush1.msra.mxu0 0.0
        %1574 = vmatprep.subr.mxu0 0.0
        %1575 = vmatpush1.msra.mxu0 0.0
        %1576 = vmatprep.subr.mxu0 0.0
        %1577 = vmatpush1.msra.mxu0 0.0
        %1578 = vmatprep.subr.mxu0 0.0
        %1579 = vmatpush1.msra.mxu0 0.0
        %1580 = vmatprep.subr.mxu0 0.0
        %1581 = vmatpush1.msra.mxu0 0.0
        %1582 = vmatprep.subr.mxu0 0.0
        %1583 = vmatpush1.msra.mxu0 0.0
        %1584 = vmatprep.subr.mxu0 0.0
        %1585 = vmatpush1.msra.mxu0 0.0
        %1586 = vmatprep.subr.mxu0 0.0
        %1587 = vmatpush1.msra.mxu0 0.0
        %1588 = vmatprep.subr.mxu0 0.0
        %1589 = vmatpush1.msra.mxu0 0.0
        %1590 = vmatprep.subr.mxu0 0.0
        %1591 = vmatpush1.msra.mxu0 0.0
        %1592 = vmatprep.subr.mxu0 0.0
        %1593 = vmatpush1.msra.mxu0 0.0
        %1594 = vmatprep.subr.mxu0 0.0
        %1595 = vmatpush1.msra.mxu0 0.0
        %1596 = vmatprep.subr.mxu0 0.0
        %1597 = vmatpush1.msra.mxu0 0.0
        %1598 = vmatprep.subr.mxu0 0.0
        %1599 = vmatpush1.msra.mxu0 0.0
        %1600 = vmatprep.subr.mxu0 0.0
        %1601 = vmatpush1.msra.mxu0 0.0
        %1602 = vmatprep.subr.mxu0 0.0
        %1603 = vmatpush1.msra.mxu0 0.0
        %1604 = vmatprep.mubr.f32.mxu0 0.0
        %1605 = vmatmul.mubr.f32.gmra.mrb[0].mxu0 %v1536
        %v1606 = vpop.f32.mrb[0].mxu0
        %v1607 = vadd.f32 0.0, %v1606
        %v1608 = vpop.f32.mrb[0].mxu0
        %1609 = vdwg.mxu0
        %v1610 = vld [vmem:[%s7 + $0x10] sm:$0xff]
        %v1611 = vld [vmem:[%s7 + $0x18] sm:$0xff]
        %v1613 = vsel %vm1258, %v1607, 0
        %1615 = vmatprep.subr.mxu0 0.0
        %1616 = vmatpush1.msra.mxu0 %v1610
        %1617 = vmatprep.subr.mxu0 0.0
        %1618 = vmatpush1.msra.mxu0 %v1611
        %1619 = vmatprep.subr.mxu0 0.0
        %1620 = vmatpush1.msra.mxu0 0.0
        %1621 = vmatprep.subr.mxu0 0.0
        %1622 = vmatpush1.msra.mxu0 0.0
        %1623 = vmatprep.subr.mxu0 0.0
        %1624 = vmatpush1.msra.mxu0 0.0
        %1625 = vmatprep.subr.mxu0 0.0
        %1626 = vmatpush1.msra.mxu0 0.0
        %1627 = vmatprep.subr.mxu0 0.0
        %1628 = vmatpush1.msra.mxu0 0.0
        %1629 = vmatprep.subr.mxu0 0.0
        %1630 = vmatpush1.msra.mxu0 0.0
        %1631 = vmatprep.subr.mxu0 0.0
        %1632 = vmatpush1.msra.mxu0 0.0
        %1633 = vmatprep.subr.mxu0 0.0
        %1634 = vmatpush1.msra.mxu0 0.0
        %1635 = vmatprep.subr.mxu0 0.0
        %1636 = vmatpush1.msra.mxu0 0.0
        %1637 = vmatprep.subr.mxu0 0.0
        %1638 = vmatpush1.msra.mxu0 0.0
        %1639 = vmatprep.subr.mxu0 0.0
        %1640 = vmatpush1.msra.mxu0 0.0
        %1641 = vmatprep.subr.mxu0 0.0
        %1642 = vmatpush1.msra.mxu0 0.0
        %1643 = vmatprep.subr.mxu0 0.0
        %1644 = vmatpush1.msra.mxu0 0.0
        %1645 = vmatprep.subr.mxu0 0.0
        %1646 = vmatpush1.msra.mxu0 0.0
        %1647 = vmatprep.subr.mxu0 0.0
        %1648 = vmatpush1.msra.mxu0 0.0
        %1649 = vmatprep.subr.mxu0 0.0
        %1650 = vmatpush1.msra.mxu0 0.0
        %1651 = vmatprep.subr.mxu0 0.0
        %1652 = vmatpush1.msra.mxu0 0.0
        %1653 = vmatprep.subr.mxu0 0.0
        %1654 = vmatpush1.msra.mxu0 0.0
        %1655 = vmatprep.subr.mxu0 0.0
        %1656 = vmatpush1.msra.mxu0 0.0
        %1657 = vmatprep.subr.mxu0 0.0
        %1658 = vmatpush1.msra.mxu0 0.0
        %1659 = vmatprep.subr.mxu0 0.0
        %1660 = vmatpush1.msra.mxu0 0.0
        %1661 = vmatprep.subr.mxu0 0.0
        %1662 = vmatpush1.msra.mxu0 0.0
        %1663 = vmatprep.subr.mxu0 0.0
        %1664 = vmatpush1.msra.mxu0 0.0
        %1665 = vmatprep.subr.mxu0 0.0
        %1666 = vmatpush1.msra.mxu0 0.0
        %1667 = vmatprep.subr.mxu0 0.0
        %1668 = vmatpush1.msra.mxu0 0.0
        %1669 = vmatprep.subr.mxu0 0.0
        %1670 = vmatpush1.msra.mxu0 0.0
        %1671 = vmatprep.subr.mxu0 0.0
        %1672 = vmatpush1.msra.mxu0 0.0
        %1673 = vmatprep.subr.mxu0 0.0
        %1674 = vmatpush1.msra.mxu0 0.0
        %1675 = vmatprep.subr.mxu0 0.0
        %1676 = vmatpush1.msra.mxu0 0.0
        %1677 = vmatprep.subr.mxu0 0.0
        %1678 = vmatpush1.msra.mxu0 0.0
        %1679 = vmatprep.mubr.f32.mxu0 0.0
        %1680 = vmatmul.mubr.f32.gmra.mrb[0].mxu0 %v1613
        %v1681 = vpop.f32.mrb[0].mxu0
        %v1682 = vadd.f32 0.0, %v1681
        %v1683 = vpop.f32.mrb[0].mxu0
        %1684 = vdwg.mxu0
        %v1686 = vsel %vm1258, %v1430, 0
        %1688 = vmatprep.subr.mxu0 0.0
        %1689 = vmatpush1.msra.mxu0 %v1433
        %1690 = vmatprep.subr.mxu0 0.0
        %1691 = vmatpush1.msra.mxu0 %v1434
        %1692 = vmatprep.subr.mxu0 0.0
        %1693 = vmatpush1.msra.mxu0 0.0
        %1694 = vmatprep.subr.mxu0 0.0
        %1695 = vmatpush1.msra.mxu0 0.0
        %1696 = vmatprep.subr.mxu0 0.0
        %1697 = vmatpush1.msra.mxu0 0.0
        %1698 = vmatprep.subr.mxu0 0.0
        %1699 = vmatpush1.msra.mxu0 0.0
        %1700 = vmatprep.subr.mxu0 0.0
        %1701 = vmatpush1.msra.mxu0 0.0
        %1702 = vmatprep.subr.mxu0 0.0
        %1703 = vmatpush1.msra.mxu0 0.0
        %1704 = vmatprep.subr.mxu0 0.0
        %1705 = vmatpush1.msra.mxu0 0.0
        %1706 = vmatprep.subr.mxu0 0.0
        %1707 = vmatpush1.msra.mxu0 0.0
        %1708 = vmatprep.subr.mxu0 0.0
        %1709 = vmatpush1.msra.mxu0 0.0
        %1710 = vmatprep.subr.mxu0 0.0
        %1711 = vmatpush1.msra.mxu0 0.0
        %1712 = vmatprep.subr.mxu0 0.0
        %1713 = vmatpush1.msra.mxu0 0.0
        %1714 = vmatprep.subr.mxu0 0.0
        %1715 = vmatpush1.msra.mxu0 0.0
        %1716 = vmatprep.subr.mxu0 0.0
        %1717 = vmatpush1.msra.mxu0 0.0
        %1718 = vmatprep.subr.mxu0 0.0
        %1719 = vmatpush1.msra.mxu0 0.0
        %1720 = vmatprep.subr.mxu0 0.0
        %1721 = vmatpush1.msra.mxu0 0.0
        %1722 = vmatprep.subr.mxu0 0.0
        %1723 = vmatpush1.msra.mxu0 0.0
        %1724 = vmatprep.subr.mxu0 0.0
        %1725 = vmatpush1.msra.mxu0 0.0
        %1726 = vmatprep.subr.mxu0 0.0
        %1727 = vmatpush1.msra.mxu0 0.0
        %1728 = vmatprep.subr.mxu0 0.0
        %1729 = vmatpush1.msra.mxu0 0.0
        %1730 = vmatprep.subr.mxu0 0.0
        %1731 = vmatpush1.msra.mxu0 0.0
        %1732 = vmatprep.subr.mxu0 0.0
        %1733 = vmatpush1.msra.mxu0 0.0
        %1734 = vmatprep.subr.mxu0 0.0
        %1735 = vmatpush1.msra.mxu0 0.0
        %1736 = vmatprep.subr.mxu0 0.0
        %1737 = vmatpush1.msra.mxu0 0.0
        %1738 = vmatprep.subr.mxu0 0.0
        %1739 = vmatpush1.msra.mxu0 0.0
        %1740 = vmatprep.subr.mxu0 0.0
        %1741 = vmatpush1.msra.mxu0 0.0
        %1742 = vmatprep.subr.mxu0 0.0
        %1743 = vmatpush1.msra.mxu0 0.0
        %1744 = vmatprep.subr.mxu0 0.0
        %1745 = vmatpush1.msra.mxu0 0.0
        %1746 = vmatprep.subr.mxu0 0.0
        %1747 = vmatpush1.msra.mxu0 0.0
        %1748 = vmatprep.subr.mxu0 0.0
        %1749 = vmatpush1.msra.mxu0 0.0
        %1750 = vmatprep.subr.mxu0 0.0
        %1751 = vmatpush1.msra.mxu0 0.0
        %1752 = vmatprep.mubr.f32.mxu0 0.0
        %1753 = vmatmul.mubr.f32.gmra.mrb[0].mxu0 %v1686
        %v1754 = vpop.f32.mrb[0].mxu0
        %v1755 = vadd.f32 %v1682, %v1754
        %v1756 = vpop.f32.mrb[0].mxu0
        %1757 = vdwg.mxu0
        %v1758 = vlaneseq
        %v1759 = vshrl.u32 %v1758, 7
        %v1760 = vsub.s32 0, %v1759
        %v1761 = vrot.slane %v622, %v1760
        %v1762 = vadd.f32 %v1755, %v1761
        %v1763 = vmul.f32 %v1529, 0.5
        %v1765 = vsel %vm1338, %v1763, 0
        %v1767 = vsel %vm1360, %v620, 0
        %1769 = vmatprep.subr.mxu0 0.0
        %1770 = vmatpush1.msra.mxu0 %v619
        %1771 = vmatprep.subr.mxu0 0.0
        %1772 = vmatpush1.msra.mxu0 %v1767
        %1773 = vmatprep.subr.mxu0 0.0
        %1774 = vmatpush1.msra.mxu0 0.0
        %1775 = vmatprep.subr.mxu0 0.0
        %1776 = vmatpush1.msra.mxu0 0.0
        %1777 = vmatprep.subr.mxu0 0.0
        %1778 = vmatpush1.msra.mxu0 0.0
        %1779 = vmatprep.subr.mxu0 0.0
        %1780 = vmatpush1.msra.mxu0 0.0
        %1781 = vmatprep.subr.mxu0 0.0
        %1782 = vmatpush1.msra.mxu0 0.0
        %1783 = vmatprep.subr.mxu0 0.0
        %1784 = vmatpush1.msra.mxu0 0.0
        %1785 = vmatprep.subr.mxu0 0.0
        %1786 = vmatpush1.msra.mxu0 0.0
        %1787 = vmatprep.subr.mxu0 0.0
        %1788 = vmatpush1.msra.mxu0 0.0
        %1789 = vmatprep.subr.mxu0 0.0
        %1790 = vmatpush1.msra.mxu0 0.0
        %1791 = vmatprep.subr.mxu0 0.0
        %1792 = vmatpush1.msra.mxu0 0.0
        %1793 = vmatprep.subr.mxu0 0.0
        %1794 = vmatpush1.msra.mxu0 0.0
        %1795 = vmatprep.subr.mxu0 0.0
        %1796 = vmatpush1.msra.mxu0 0.0
        %1797 = vmatprep.subr.mxu0 0.0
        %1798 = vmatpush1.msra.mxu0 0.0
        %1799 = vmatprep.subr.mxu0 0.0
        %1800 = vmatpush1.msra.mxu0 0.0
        %1801 = vmatprep.subr.mxu0 0.0
        %1802 = vmatpush1.msra.mxu0 0.0
        %1803 = vmatprep.subr.mxu0 0.0
        %1804 = vmatpush1.msra.mxu0 0.0
        %1805 = vmatprep.subr.mxu0 0.0
        %1806 = vmatpush1.msra.mxu0 0.0
        %1807 = vmatprep.subr.mxu0 0.0
        %1808 = vmatpush1.msra.mxu0 0.0
        %1809 = vmatprep.subr.mxu0 0.0
        %1810 = vmatpush1.msra.mxu0 0.0
        %1811 = vmatprep.subr.mxu0 0.0
        %1812 = vmatpush1.msra.mxu0 0.0
        %1813 = vmatprep.subr.mxu0 0.0
        %1814 = vmatpush1.msra.mxu0 0.0
        %1815 = vmatprep.subr.mxu0 0.0
        %1816 = vmatpush1.msra.mxu0 0.0
        %1817 = vmatprep.subr.mxu0 0.0
        %1818 = vmatpush1.msra.mxu0 0.0
        %1819 = vmatprep.subr.mxu0 0.0
        %1820 = vmatpush1.msra.mxu0 0.0
        %1821 = vmatprep.subr.mxu0 0.0
        %1822 = vmatpush1.msra.mxu0 0.0
        %1823 = vmatprep.subr.mxu0 0.0
        %1824 = vmatpush1.msra.mxu0 0.0
        %1825 = vmatprep.subr.mxu0 0.0
        %1826 = vmatpush1.msra.mxu0 0.0
        %1827 = vmatprep.subr.mxu0 0.0
        %1828 = vmatpush1.msra.mxu0 0.0
        %1829 = vmatprep.subr.mxu0 0.0
        %1830 = vmatpush1.msra.mxu0 0.0
        %1831 = vmatprep.subr.mxu0 0.0
        %1832 = vmatpush1.msra.mxu0 0.0
        %1833 = vmatprep.mubr.f32.mxu0 0.0
        %1834 = vmatmul.mubr.f32.gmra.mrb[0].mxu0 %v1765
        %v1835 = vpop.f32.mrb[0].mxu0
        %v1836 = vadd.f32 0.0, %v1835
        %v1837 = vpop.f32.mrb[0].mxu0
        %1838 = vdwg.mxu0
        %v1839 = vadd.f32 %v618, %v1836
        %v1840 = vsel %vm1338, %v1763, 0.0
        %1841 = vadd.xlane.f32.xlu0 %v1840
        %v1842 = vpop.xlane.xlu0 %1841
        %v1843 = vmul.f32 %v1842, %v618
        %v1844 = vsub.f32 %v1839, %v1843
        %v1845 = vsel %vm634, %v1762, 0.0
        %1846 = vadd.xlane.f32.xlu0 %v1845
        %v1847 = vpop.xlane.xlu0 %1846
        %v1848 = vrcp.pop 32.0
        %v1849 = vmul.f32 %v1847, %v1848
        %v1850 = vsub.f32 %v1762, %v1849
        %v1851 = vmul.f32 %v1850, %v1850
        %v1852 = vsel %vm634, %v1851, 0.0
        %1853 = vadd.xlane.f32.xlu0 %v1852
        %v1854 = vpop.xlane.xlu0 %1853
        %v1855 = vmul.f32 %v1854, %v1848
        %v1856 = vadd.f32 %v1855, 1e-05
        %v1857 = vrsqrt.pop %v1856
        %v1858 = vmul.f32 %v1850, %v1857
        %v1859 = vlaneseq
        %v1860 = vshrl.u32 %v1859, 7
        %v1861 = vsub.s32 0, %v1860
        %v1862 = vrot.slane %v624, %v1861
        %v1863 = vmul.f32 %v1858, %v1862
        %v1864 = vlaneseq
        %v1865 = vshrl.u32 %v1864, 7
        %v1866 = vsub.s32 0, %v1865
        %v1867 = vrot.slane %v625, %v1866
        %v1868 = vadd.f32 %v1863, %v1867
        %v1869 = vadd.f32 %v615, %v1868
        %v1870 = vld [vmem:[%s10] sm:$0xff]
        %v1871 = vld [vmem:[%s10 + $0x8] sm:$0xff]
        %v1872 = vld [vmem:[%s10 + $0x10] sm:$0xff]
        %v1873 = vld [vmem:[%s10 + $0x18] sm:$0xff]
        %v1874 = vlaneseq
        %v1875 = vshrl.u32 %v1874, 7
        %v1876 = vsub.s32 0, %v1875
        %v1877 = vrot.slane %v628, %v1876
        %v1879 = vsel %vm634, %v1869, 0
        %1881 = vmatprep.subr.mxu0 0.0
        %1882 = vmatpush1.msra.mxu0 %v1870
        %1883 = vmatprep.subr.mxu0 0.0
        %1884 = vmatpush1.msra.mxu0 %v1871
        %1885 = vmatprep.subr.mxu0 0.0
        %1886 = vmatpush1.msra.mxu0 %v1872
        %1887 = vmatprep.subr.mxu0 0.0
        %1888 = vmatpush1.msra.mxu0 %v1873
        %1889 = vmatprep.subr.mxu0 0.0
        %1890 = vmatpush1.msra.mxu0 0.0
        %1891 = vmatprep.subr.mxu0 0.0
        %1892 = vmatpush1.msra.mxu0 0.0
        %1893 = vmatprep.subr.mxu0 0.0
        %1894 = vmatpush1.msra.mxu0 0.0
        %1895 = vmatprep.subr.mxu0 0.0
        %1896 = vmatpush1.msra.mxu0 0.0
        %1897 = vmatprep.subr.mxu0 0.0
        %1898 = vmatpush1.msra.mxu0 0.0
        %1899 = vmatprep.subr.mxu0 0.0
        %1900 = vmatpush1.msra.mxu0 0.0
        %1901 = vmatprep.subr.mxu0 0.0
        %1902 = vmatpush1.msra.mxu0 0.0
        %1903 = vmatprep.subr.mxu0 0.0
        %1904 = vmatpush1.msra.mxu0 0.0
        %1905 = vmatprep.subr.mxu0 0.0
        %1906 = vmatpush1.msra.mxu0 0.0
        %1907 = vmatprep.subr.mxu0 0.0
        %1908 = vmatpush1.msra.mxu0 0.0
        %1909 = vmatprep.subr.mxu0 0.0
        %1910 = vmatpush1.msra.mxu0 0.0
        %1911 = vmatprep.subr.mxu0 0.0
        %1912 = vmatpush1.msra.mxu0 0.0
        %1913 = vmatprep.subr.mxu0 0.0
        %1914 = vmatpush1.msra.mxu0 0.0
        %1915 = vmatprep.subr.mxu0 0.0
        %1916 = vmatpush1.msra.mxu0 0.0
        %1917 = vmatprep.subr.mxu0 0.0
        %1918 = vmatpush1.msra.mxu0 0.0
        %1919 = vmatprep.subr.mxu0 0.0
        %1920 = vmatpush1.msra.mxu0 0.0
        %1921 = vmatprep.subr.mxu0 0.0
        %1922 = vmatpush1.msra.mxu0 0.0
        %1923 = vmatprep.subr.mxu0 0.0
        %1924 = vmatpush1.msra.mxu0 0.0
        %1925 = vmatprep.subr.mxu0 0.0
        %1926 = vmatpush1.msra.mxu0 0.0
        %1927 = vmatprep.subr.mxu0 0.0
        %1928 = vmatpush1.msra.mxu0 0.0
        %1929 = vmatprep.subr.mxu0 0.0
        %1930 = vmatpush1.msra.mxu0 0.0
        %1931 = vmatprep.subr.mxu0 0.0
        %1932 = vmatpush1.msra.mxu0 0.0
        %1933 = vmatprep.subr.mxu0 0.0
        %1934 = vmatpush1.msra.mxu0 0.0
        %1935 = vmatprep.subr.mxu0 0.0
        %1936 = vmatpush1.msra.mxu0 0.0
        %1937 = vmatprep.subr.mxu0 0.0
        %1938 = vmatpush1.msra.mxu0 0.0
        %1939 = vmatprep.subr.mxu0 0.0
        %1940 = vmatpush1.msra.mxu0 0.0
        %1941 = vmatprep.subr.mxu0 0.0
        %1942 = vmatpush1.msra.mxu0 0.0
        %1943 = vmatprep.subr.mxu0 0.0
        %1944 = vmatpush1.msra.mxu0 0.0
        %1945 = vmatprep.mubr.f32.mxu0 0.0
        %1946 = vmatmul.mubr.f32.gmra.mrb[0].mxu0 %v1879
        %v1947 = vpop.f32.mrb[0].mxu0
        %v1948 = vadd.f32 %v1877, %v1947
        %v1949 = vpop.f32.mrb[0].mxu0
        %1950 = vdwg.mxu0
        %v1951 = vmax.f32 %v1948, 0.0
        %v1952 = vld [vmem:[%s11] sm:$0xff]
        %v1953 = vld [vmem:[%s11 + $0x8] sm:$0xff]
        %v1954 = vld [vmem:[%s11 + $0x10] sm:$0xff]
        %v1955 = vld [vmem:[%s11 + $0x18] sm:$0xff]
        %v1956 = vlaneseq
        %v1957 = vshrl.u32 %v1956, 7
        %v1958 = vsub.s32 0, %v1957
        %v1959 = vrot.slane %v629, %v1958
        %v1961 = vsel %vm634, %v1951, 0
        %1963 = vmatprep.subr.mxu0 0.0
        %1964 = vmatpush1.msra.mxu0 %v1952
        %1965 = vmatprep.subr.mxu0 0.0
        %1966 = vmatpush1.msra.mxu0 %v1953
        %1967 = vmatprep.subr.mxu0 0.0
        %1968 = vmatpush1.msra.mxu0 %v1954
        %1969 = vmatprep.subr.mxu0 0.0
        %1970 = vmatpush1.msra.mxu0 %v1955
        %1971 = vmatprep.subr.mxu0 0.0
        %1972 = vmatpush1.msra.mxu0 0.0
        %1973 = vmatprep.subr.mxu0 0.0
        %1974 = vmatpush1.msra.mxu0 0.0
        %1975 = vmatprep.subr.mxu0 0.0
        %1976 = vmatpush1.msra.mxu0 0.0
        %1977 = vmatprep.subr.mxu0 0.0
        %1978 = vmatpush1.msra.mxu0 0.0
        %1979 = vmatprep.subr.mxu0 0.0
        %1980 = vmatpush1.msra.mxu0 0.0
        %1981 = vmatprep.subr.mxu0 0.0
        %1982 = vmatpush1.msra.mxu0 0.0
        %1983 = vmatprep.subr.mxu0 0.0
        %1984 = vmatpush1.msra.mxu0 0.0
        %1985 = vmatprep.subr.mxu0 0.0
        %1986 = vmatpush1.msra.mxu0 0.0
        %1987 = vmatprep.subr.mxu0 0.0
        %1988 = vmatpush1.msra.mxu0 0.0
        %1989 = vmatprep.subr.mxu0 0.0
        %1990 = vmatpush1.msra.mxu0 0.0
        %1991 = vmatprep.subr.mxu0 0.0
        %1992 = vmatpush1.msra.mxu0 0.0
        %1993 = vmatprep.subr.mxu0 0.0
        %1994 = vmatpush1.msra.mxu0 0.0
        %1995 = vmatprep.subr.mxu0 0.0
        %1996 = vmatpush1.msra.mxu0 0.0
        %1997 = vmatprep.subr.mxu0 0.0
        %1998 = vmatpush1.msra.mxu0 0.0
        %1999 = vmatprep.subr.mxu0 0.0
        %2000 = vmatpush1.msra.mxu0 0.0
        %2001 = vmatprep.subr.mxu0 0.0
        %2002 = vmatpush1.msra.mxu0 0.0
        %2003 = vmatprep.subr.mxu0 0.0
        %2004 = vmatpush1.msra.mxu0 0.0
        %2005 = vmatprep.subr.mxu0 0.0
        %2006 = vmatpush1.msra.mxu0 0.0
        %2007 = vmatprep.subr.mxu0 0.0
        %2008 = vmatpush1.msra.mxu0 0.0
        %2009 = vmatprep.subr.mxu0 0.0
        %2010 = vmatpush1.msra.mxu0 0.0
        %2011 = vmatprep.subr.mxu0 0.0
        %2012 = vmatpush1.msra.mxu0 0.0
        %2013 = vmatprep.subr.mxu0 0.0
        %2014 = vmatpush1.msra.mxu0 0.0
        %2015 = vmatprep.subr.mxu0 0.0
        %2016 = vmatpush1.msra.mxu0 0.0
        %2017 = vmatprep.subr.mxu0 0.0
        %2018 = vmatpush1.msra.mxu0 0.0
        %2019 = vmatprep.subr.mxu0 0.0
        %2020 = vmatpush1.msra.mxu0 0.0
        %2021 = vmatprep.subr.mxu0 0.0
        %2022 = vmatpush1.msra.mxu0 0.0
        %2023 = vmatprep.subr.mxu0 0.0
        %2024 = vmatpush1.msra.mxu0 0.0
        %2025 = vmatprep.subr.mxu0 0.0
        %2026 = vmatpush1.msra.mxu0 0.0
        %2027 = vmatprep.mubr.f32.mxu0 0.0
        %2028 = vmatmul.mubr.f32.gmra.mrb[0].mxu0 %v1961
        %v2029 = vpop.f32.mrb[0].mxu0
        %v2030 = vadd.f32 %v1959, %v2029
        %v2031 = vpop.f32.mrb[0].mxu0
        %2032 = vdwg.mxu0
        %v2033 = vadd.f32 %v1869, %v2030
        %v2034 = vsel %vm634, %v2033, 0.0
        %2035 = vadd.xlane.f32.xlu0 %v2034
        %v2036 = vpop.xlane.xlu0 %2035
        %v2037 = vmul.f32 %v2036, %v1848
        %v2038 = vsub.f32 %v2033, %v2037
        %v2039 = vmul.f32 %v2038, %v2038
        %v2040 = vsel %vm634, %v2039, 0.0
        %2041 = vadd.xlane.f32.xlu0 %v2040
        %v2042 = vpop.xlane.xlu0 %2041
        %v2043 = vmul.f32 %v2042, %v1848
        %v2044 = vadd.f32 %v2043, 1e-05
        %v2045 = vrsqrt.pop %v2044
        %v2046 = vmul.f32 %v2038, %v2045
        %v2047 = vlaneseq
        %v2048 = vshrl.u32 %v2047, 7
        %v2049 = vsub.s32 0, %v2048
        %v2050 = vrot.slane %v626, %v2049
        %v2051 = vmul.f32 %v2046, %v2050
        %v2052 = vlaneseq
        %v2053 = vshrl.u32 %v2052, 7
        %v2054 = vsub.s32 0, %v2053
        %v2055 = vrot.slane %v627, %v2054
        %v2056 = vadd.f32 %v2051, %v2055
        %2057 = vst.msk [vmem:[%s590] sm:$0xff] %vm634, %v2056
        %vm2058 = vcmask 15360
        %2059 = vst.msk [vmem:[%s614] sm:$0xff] %vm2058, %v1844
        %s2060 = sand.u32 %s342, 1
        %s2061 = scalar_lea.sflag [#allocation4], %s2060
        %s2062 = sand.u32 %s342, 1
        %s2063 = smul.addr %s2062, 8
        %s2064 = scalar_lea.vmem [#allocation10], %s2063
        %p2065 = scmp.lt.s32.totalorder %s36, 1
        %s2066 = scalar_select %p2065, %s36, 1
        %s2067 = smul.addr %s2066, 8
        %s2068 = scalar_lea.vmem %s14, %s2067
        // Predicated region
        $region89: #{tpu_custom_call.1} parent=71 // pred_check
          %p2069 = pneg %p352
        $region90: #{tpu_custom_call.1} parent=71 // pred_check_branch
          %2071 = sbr.rel (%p2069) target = $region92
        $region91: #{tpu_custom_call.1} parent=71 // pred_region
          %s2073 = ssub.s32 128, 128
          %2074 = vsyncadd %s2061, %s2073
          %s2075 = smul.addr %s36, 128
          %s2076 = scalar_lea.hbm %s13, %s2075
          %s2078 = sshll.u32 %s2064, 4
          %s2079 = int_to_ptr.vmem [resolvable:$true] %s2078
          %2081 = dma.vmem_to_hbm [thread:$0]  %s2079, 128, %s2076, %s2061
        $region92: #{tpu_custom_call.1} parent=71 // pred_fallthru
          _
        // Predicated region
        $region93: #{tpu_custom_call.1} parent=71 // pred_check
          %p2082 = pneg %p378
        $region94: #{tpu_custom_call.1} parent=71 // pred_check_branch
          %2084 = sbr.rel (%p2082) target = $region96
        $region95: #{tpu_custom_call.1} parent=71 // pred_region
          _
        $region96: #{tpu_custom_call.1} parent=71 // pred_fallthru
          _
      $region72: #{tpu_custom_call.1} parent=5 // pred_fallthru
        _
      %p2085 = scmp.le.s32.totalorder 2, %s31
      // Predicated region
      $region97: #{tpu_custom_call.1} parent=5 // pred_check
        %p2086 = pneg %p2085
      $region98: #{tpu_custom_call.1} parent=5 // pred_check_branch
        %2088 = sbr.rel (%p2086) target = $region100
      $region99: #{tpu_custom_call.1} parent=5 // pred_region
        %s2089 = ssub.s32 %s31, 2
        // Predicated region
        $region101: #{tpu_custom_call.1} parent=99 // pred_check
          %p2090 = pneg %p358
        $region102: #{tpu_custom_call.1} parent=99 // pred_check_branch
          %2092 = sbr.rel (%p2090) target = $region104
        $region103: #{tpu_custom_call.1} parent=99 // pred_region
          %s2093 = sand.u32 %s343, 1
          %s2094 = scalar_lea.sflag [#allocation4], %s2093
          %s2095 = sand.u32 %s343, 1
          %s2096 = smul.addr %s2095, 8
          %s2097 = scalar_lea.vmem [#allocation10], %s2096
          %2098 = dma.done %s2094, 128
        $region104: #{tpu_custom_call.1} parent=99 // pred_fallthru
          _
        // Predicated region
        $region105: #{tpu_custom_call.1} parent=99 // pred_check
          %p2099 = pneg %p384
        $region106: #{tpu_custom_call.1} parent=99 // pred_check_branch
          %2101 = sbr.rel (%p2099) target = $region108
        $region107: #{tpu_custom_call.1} parent=99 // pred_region
          %p2102 = scmp.lt.s32.totalorder %s37, 1
          %s2103 = scalar_select %p2102, %s37, 1
          %s2104 = smul.addr %s2103, 8
          %s2105 = scalar_lea.vmem %s14, %s2104
        $region108: #{tpu_custom_call.1} parent=99 // pred_fallthru
          _
      $region100: #{tpu_custom_call.1} parent=5 // pred_fallthru
        _
    $region6: #{tpu_custom_call.1} parent=1 // loop_footer
      %s35 = sadd.s32 1, %s31
    $region7: #{tpu_custom_call.1} parent=1 // loop_footer_branch
      %30 = sbr.rel target = $region3
    $region8: #{tpu_custom_call.1} parent=1 // loop_exit
      _
    %2106 = vsyncpa [#allocation3], 1
    %s2107 = scalar_lea.sflag [#allocation3], 1
    %2108 = vsyncpa %s2107, 1
    %2109 = vsyncpa [#allocation6], 1
    %s2110 = scalar_lea.sflag [#allocation6], 1
    %2111 = vsyncpa %s2110, 1
    %2112 = vsyncpa [#allocation9], 1
    %2113 = vsyncpa [#allocation4], 1
    %s2114 = scalar_lea.sflag [#allocation4], 1
    %2115 = vsyncpa %s2114, 1

</llo_original>
